<compile_context>
chip_gen: v7x
topology: tpu7x:2x2x1
jax: 0.10.0
libtpu: 0.0.40
codegen_flags: <defaults>
</compile_context>

<pallas_src>
import functools
import math

import numpy as np
import jax
import jax.numpy as jnp
from jax.experimental import pallas as pl
from jax.experimental.pallas import tpu as pltpu

LAYER_NORM_EPS = 1e-05
NEG_INF = -1e20  # ParlAI neginf() for float32


def _dot(a, b):
    return jnp.dot(a, b, preferred_element_type=jnp.float32)


# ----------------------------------------------------------------------------
# Fused Pallas kernel: all encoder layers + masked-mean pooling + response MLP
# ----------------------------------------------------------------------------
def fused_encoder_mlp_kernel(x_ref, mrow_ref,
                             wqkv_ref, bqkv_ref, wo_ref, bo_ref,
                             g1_ref, be1_ref, w1_ref, c1_ref,
                             w2_ref, c2_ref, g2_ref, be2_ref,
                             wm1_ref, cm1_ref, wm2_ref, cm2_ref,
                             out_ref, act_ref,
                             *, n_heads, output_scaling):
    """One grid step = one encoder layer ('aiayn' post-norm, eval/dropout=0)
    for one block of Bt batch rows.  act_ref (VMEM scratch, flattened to
    (Bt*S, D)) carries the activation across the layer axis of the grid."""
    l = pl.program_id(1)
    n_layers = pl.num_programs(1)

    Bt, S, D = x_ref.shape
    dph = D // n_heads
    inv_scale = jnp.float32(1.0 / math.sqrt(dph))

    @pl.when(l == 0)
    def _init():
        act_ref[...] = x_ref[...].reshape(Bt * S, D)   # embedded + masked input

    x2 = act_ref[...]                    # (Bt*S, D)  position-major slab
    mrow = mrow_ref[...]                 # (Bt, 1, S)  1.0 = attend, 0.0 = pad

    def layer_norm(t, gamma, beta):
        mu = jnp.mean(t, axis=-1, keepdims=True)
        var = jnp.mean((t - mu) ** 2, axis=-1, keepdims=True)
        return (t - mu) * jax.lax.rsqrt(var + LAYER_NORM_EPS) * gamma + beta

    # ---- self-attention: fused QKV projection, one wide MXU pass over Bt*S rows
    qkv2 = _dot(x2, wqkv_ref[0]) + bqkv_ref[0]          # (Bt*S, 3D)
    qkv = qkv2.reshape(Bt, S, 3 * D)

    ctxs = []
    for h in range(n_heads):             # static loop; small head count
        lo = h * dph
        qh = qkv[..., lo:lo + dph] * inv_scale          # (Bt, S, dph)
        kh = qkv[..., D + lo:D + lo + dph]
        vh = qkv[..., 2 * D + lo:2 * D + lo + dph]
        s = jnp.einsum('bqd,bkd->bqk', qh, kh,
                       preferred_element_type=jnp.float32)      # (Bt, S, S)
        s = jnp.where(mrow == 0.0, NEG_INF, s)          # key mask (reference semantics)
        s = s - jnp.max(s, axis=-1, keepdims=True)
        p = jnp.exp(s)
        p = p / jnp.sum(p, axis=-1, keepdims=True)      # EXACT divide (numerics fix)
        ctxs.append(jnp.einsum('bqk,bkd->bqd', p, vh,
                               preferred_element_type=jnp.float32))
    # concat heads -> single full-K output projection (better MXU fill than
    # per-head (dph)-deep matmuls)
    ctx2 = jnp.concatenate(ctxs, axis=-1).reshape(Bt * S, D)
    att2 = _dot(ctx2, wo_ref[0]) + bo_ref[0]

    # ---- residual + norm1 (post-norm) ----
    t2 = layer_norm(x2 + att2, g1_ref[0], be1_ref[0])

    # ---- FFN (relu) + residual + norm2 ----
    ffn2 = _dot(jnp.maximum(_dot(t2, w1_ref[0]) + c1_ref[0], 0.0),
                w2_ref[0]) + c2_ref[0]
    t2 = layer_norm(t2 + ffn2, g2_ref[0], be2_ref[0])

    # NOTE: per-layer re-zeroing of padded rows is intentionally skipped —
    # padded keys get exactly-0 softmax weight (exp(NEG_INF - max) == 0.0 in
    # fp32) so padded rows never influence non-padded rows, and the pooled
    # sum below is masked.  Final output matches the reference bit-for-bit
    # in ordering semantics.
    act_ref[...] = t2

    # ---- last layer: masked mean + output_scaling + response MLP head ----
    @pl.when(l == n_layers - 1)
    def _finalize():
        t = t2.reshape(Bt, S, D)
        div = jnp.maximum(jnp.sum(mrow, axis=2, keepdims=True), 1.0)     # (Bt,1,1)
        pooled = jnp.einsum('bos,bsd->bod', mrow, t,
                            preferred_element_type=jnp.float32)          # masked sum
        pooled = (pooled * (jnp.float32(output_scaling) / div)).reshape(Bt, D)
        hid = jnp.maximum(_dot(pooled, wm1_ref[...]) + cm1_ref[...], 0.0)
        out_ref[...] = (_dot(hid, wm2_ref[...]) + cm2_ref[...]).reshape(Bt, 1, D)


# ----------------------------------------------------------------------------
# Wrapper: embeddings in XLA, everything else in one pallas_call
# ----------------------------------------------------------------------------
def _stack_layers(layers):
    # TODO(synk): at production sizes, cast these stacks to bfloat16 (keep
    # fp32 accumulation + fp32 LN/softmax) to halve weight HBM traffic and use
    # the bf16 MXU rate; kept fp32 here for exact parity with the fp32 reference.
    st = dict(
        wqkv=jnp.stack([jnp.concatenate([lp['wq'], lp['wk'], lp['wv']], axis=1)
                        for lp in layers]),
        bqkv=jnp.stack([jnp.concatenate([lp['bq'], lp['bk'], lp['bv']], axis=1)
                        for lp in layers]),
    )
    for name in ('wo', 'bo', 'g1', 'be1', 'w1', 'c1', 'w2', 'c2', 'g2', 'be2'):
        st[name] = jnp.stack([lp[name] for lp in layers])
    return st


def transformer_response_forward(input_ids, params, cfg, batch_block=None):
    """TransformerResponseWrapper.forward == mlp(transformer_encoder(tokens))."""
    B, S = input_ids.shape
    D, F, Hm = cfg['dim'], cfg['ffn_size'], cfg['response_hdim']
    L, H = cfg['n_layers'], cfg['n_heads']
    Bt = batch_block if batch_block is not None else B
    assert B % Bt == 0
    nb = B // Bt

    mask = (input_ids != cfg['padding_idx'])
    positions = jnp.clip(jnp.cumsum(mask.astype(jnp.int32), axis=1) - 1, 0, None)

    # TODO(synk): token/positional embedding gather (data-dependent vocab-table
    # lookup) stays in XLA; it has no clean rectangular BlockSpec equivalent.
    tensor = params['tok_emb'][input_ids]
    if cfg['embeddings_scale']:
        tensor = tensor * np.sqrt(cfg['dim']).astype(np.float32)
    tensor = tensor + params['pos_emb'][positions]
    # variant == 'aiayn': no norm_embeddings; dropout identity (eval / p=0)

    maskf = mask.astype(jnp.float32)
    tensor = tensor * maskf[..., None]
    mask_row = maskf[:, None, :]         # (B, 1, S)

    st = _stack_layers(params['layers'])
    mlp = params['mlp']

    def layer_spec(*tail):
        return pl.BlockSpec((1,) + tuple(tail), lambda b, l: (l,) + (0,) * len(tail))

    def batch_spec(*tail):
        return pl.BlockSpec((Bt,) + tuple(tail), lambda b, l: (b,) + (0,) * len(tail))

    def const_spec(*shape):
        nd = len(shape)
        return pl.BlockSpec(tuple(shape), lambda b, l: (0,) * nd)

    kernel = functools.partial(fused_encoder_mlp_kernel, n_heads=H,
                               output_scaling=cfg['output_scaling'])

    out = pl.pallas_call(
        kernel,
        out_shape=jax.ShapeDtypeStruct((B, 1, D), jnp.float32),
        grid_spec=pltpu.PrefetchScalarGridSpec(
            num_scalar_prefetch=0,
            grid=(nb, L),
            in_specs=[
                batch_spec(S, D),        # x (embedded, masked)
                batch_spec(1, S),        # mask row
                layer_spec(D, 3 * D),    # fused qkv weight
                layer_spec(1, 3 * D),    # fused qkv bias
                layer_spec(D, D),        # wo
                layer_spec(1, D),        # bo
                layer_spec(1, D),        # norm1 gamma
                layer_spec(1, D),        # norm1 beta
                layer_spec(D, F),        # ffn lin1 W
                layer_spec(1, F),        # ffn lin1 b
                layer_spec(F, D),        # ffn lin2 W
                layer_spec(1, D),        # ffn lin2 b
                layer_spec(1, D),        # norm2 gamma
                layer_spec(1, D),        # norm2 beta
                const_spec(D, Hm),       # response MLP lin1 W
                const_spec(1, Hm),       # response MLP lin1 b
                const_spec(Hm, D),       # response MLP lin2 W
                const_spec(1, D),        # response MLP lin2 b
            ],
            out_specs=pl.BlockSpec((Bt, 1, D), lambda b, l: (b, 0, 0)),
            scratch_shapes=[pltpu.VMEM((Bt * S, D), jnp.float32)],
        ),
        compiler_params=pltpu.CompilerParams(
            dimension_semantics=("parallel", "arbitrary")),
    )(tensor, mask_row,
      st['wqkv'], st['bqkv'], st['wo'], st['bo'],
      st['g1'], st['be1'], st['w1'], st['c1'], st['w2'], st['c2'],
      st['g2'], st['be2'],
      mlp['wm1'], mlp['cm1'], mlp['wm2'], mlp['cm2'])
    return out[:, 0, :]                  # (B, D)


# ----------------------------------------------------------------------------
# Pure-JAX reference (numerical check)
# ----------------------------------------------------------------------------
def reference_forward(input_ids, params, cfg):
    mask = (input_ids != cfg['padding_idx'])
    positions = jnp.clip(jnp.cumsum(mask.astype(jnp.int32), axis=1) - 1, 0, None)
    t = params['tok_emb'][input_ids]
    if cfg['embeddings_scale']:
        t = t * np.sqrt(cfg['dim']).astype(np.float32)
    t = t + params['pos_emb'][positions]
    maskf = mask.astype(jnp.float32)
    t = t * maskf[..., None]
    H = cfg['n_heads']
    B, S, D = t.shape
    dph = D // H
    for lp in params['layers']:
        q = (t @ lp['wq'] + lp['bq']) / math.sqrt(dph)
        k = t @ lp['wk'] + lp['bk']
        v = t @ lp['wv'] + lp['bv']
        qh = q.reshape(B, S, H, dph).transpose(0, 2, 1, 3)
        kh = k.reshape(B, S, H, dph).transpose(0, 2, 1, 3)
        vh = v.reshape(B, S, H, dph).transpose(0, 2, 1, 3)
        dot = jnp.einsum('bhqd,bhkd->bhqk', qh, kh)
        dot = jnp.where(maskf[:, None, None, :] == 0.0, NEG_INF, dot)
        w = jax.nn.softmax(dot, axis=-1)
        att = jnp.einsum('bhqk,bhkd->bhqd', w, vh).transpose(0, 2, 1, 3).reshape(B, S, D)
        att = att @ lp['wo'] + lp['bo']

        def ln(x, g, b):
            mu = jnp.mean(x, -1, keepdims=True)
            var = jnp.mean((x - mu) ** 2, -1, keepdims=True)
            return (x - mu) / jnp.sqrt(var + LAYER_NORM_EPS) * g + b

        t = ln(t + att, lp['g1'], lp['be1'])
        ffn = jnp.maximum(t @ lp['w1'] + lp['c1'], 0.0) @ lp['w2'] + lp['c2']
        t = ln(t + ffn, lp['g2'], lp['be2'])
        t = t * maskf[..., None]
    t = t * cfg['output_scaling']
    div = jnp.clip(maskf.sum(axis=1, keepdims=True), 1.0, None)
    pooled = t.sum(axis=1) / div
    mlp = params['mlp']
    hid = jnp.maximum(pooled @ mlp['wm1'] + mlp['cm1'], 0.0)
    return hid @ mlp['wm2'] + mlp['cm2']


# ----------------------------------------------------------------------------
# Parameter construction (deterministic, synthetic)
# ----------------------------------------------------------------------------
def make_sinusoidal_positions(n_pos, dim):
    pe = np.array([[pos / np.power(10000, 2 * j / dim) for j in range(dim // 2)]
                   for pos in range(n_pos)])
    out = np.zeros((n_pos, dim), dtype=np.float32)
    out[:, 0::2] = np.sin(pe)
    out[:, 1::2] = np.cos(pe)
    return jnp.asarray(out)


def init_params(key, cfg):
    D, F, V, Hm = cfg['dim'], cfg['ffn_size'], cfg['vocab'], cfg['response_hdim']
    keys = jax.random.split(key, 4 + cfg['n_layers'])

    tok_emb = jax.random.normal(keys[0], (V, D), jnp.float32) * (D ** -0.5)
    tok_emb = tok_emb.at[cfg['padding_idx']].set(0.0)   # nn.Embedding padding_idx
    pos_emb = make_sinusoidal_positions(cfg['n_positions'], D)

    def xavier(k, shape):
        fan_in, fan_out = shape
        std = math.sqrt(2.0 / (fan_in + fan_out))
        return jax.random.normal(k, shape, jnp.float32) * std

    layers = []
    for li in range(cfg['n_layers']):
        lk = jax.random.split(keys[4 + li], 10)
        layers.append(dict(
            wq=xavier(lk[0], (D, D)), bq=jnp.zeros((1, D), jnp.float32),
            wk=xavier(lk[1], (D, D)), bk=jnp.zeros((1, D), jnp.float32),
            wv=xavier(lk[2], (D, D)), bv=jnp.zeros((1, D), jnp.float32),
            wo=xavier(lk[3], (D, D)), bo=jnp.zeros((1, D), jnp.float32),
            g1=jnp.ones((1, D), jnp.float32), be1=jnp.zeros((1, D), jnp.float32),
            w1=xavier(lk[4], (D, F)), c1=jax.random.normal(lk[5], (1, F), jnp.float32) * 0.02,
            w2=xavier(lk[6], (F, D)), c2=jax.random.normal(lk[7], (1, D), jnp.float32) * 0.02,
            g2=jnp.ones((1, D), jnp.float32), be2=jnp.zeros((1, D), jnp.float32),
        ))

    mk = jax.random.split(keys[1], 4)
    mlp = dict(
        wm1=xavier(mk[0], (D, Hm)),
        cm1=jax.random.normal(mk[1], (1, Hm), jnp.float32) * 0.02,
        wm2=xavier(mk[2], (Hm, D)),
        cm2=jax.random.normal(mk[3], (1, D), jnp.float32) * 0.02,
    )
    return dict(tok_emb=tok_emb, pos_emb=pos_emb, layers=layers, mlp=mlp)


if __name__ == "__main__":
    cfg = dict(dim=32, ffn_size=64, n_heads=2, n_layers=2, vocab=50,
               n_positions=16, padding_idx=0, embeddings_scale=True,
               output_scaling=1.0, response_hdim=64)
    B, S = 2, 8

    key = jax.random.PRNGKey(0)
    k_param, k_tok = jax.random.split(key)
    params = init_params(k_param, cfg)

    input_ids = jax.random.randint(k_tok, (B, S), 1, cfg['vocab'], dtype=jnp.int32)
    input_ids = input_ids.at[0, 6:].set(cfg['padding_idx'])   # trailing padding
    input_ids = input_ids.at[1, 5:].set(cfg['padding_idx'])

    out = transformer_response_forward(input_ids, params, cfg)
    out = jax.block_until_ready(out)

    ref = reference_forward(input_ids, params, cfg)
    # exact softmax division -> only matmul re-association differences remain
    np.testing.assert_allclose(np.asarray(out), np.asarray(ref), rtol=3e-4, atol=3e-4)

    assert out.shape == (B, cfg['dim'])
    print("KERNEL_OK")
</pallas_src>

<mosaic_0001>
module attributes {stable_mosaic.version = 11 : i64} {
  func.func @fused_encoder_mlp_kernel(%arg0: i32, %arg1: i32, %arg2: memref<2x8x32xf32, #tpu.memory_space<vmem>>, %arg3: memref<2x1x8xf32, #tpu.memory_space<vmem>>, %arg4: memref<1x32x96xf32, #tpu.memory_space<vmem>>, %arg5: memref<1x1x96xf32, #tpu.memory_space<vmem>>, %arg6: memref<1x32x32xf32, #tpu.memory_space<vmem>>, %arg7: memref<1x1x32xf32, #tpu.memory_space<vmem>>, %arg8: memref<1x1x32xf32, #tpu.memory_space<vmem>>, %arg9: memref<1x1x32xf32, #tpu.memory_space<vmem>>, %arg10: memref<1x32x64xf32, #tpu.memory_space<vmem>>, %arg11: memref<1x1x64xf32, #tpu.memory_space<vmem>>, %arg12: memref<1x64x32xf32, #tpu.memory_space<vmem>>, %arg13: memref<1x1x32xf32, #tpu.memory_space<vmem>>, %arg14: memref<1x1x32xf32, #tpu.memory_space<vmem>>, %arg15: memref<1x1x32xf32, #tpu.memory_space<vmem>>, %arg16: memref<32x64xf32, #tpu.memory_space<vmem>>, %arg17: memref<1x64xf32, #tpu.memory_space<vmem>>, %arg18: memref<64x32xf32, #tpu.memory_space<vmem>>, %arg19: memref<1x32xf32, #tpu.memory_space<vmem>>, %arg20: memref<2x1x32xf32, #tpu.memory_space<vmem>>, %arg21: memref<16x32xf32, #tpu.memory_space<vmem>>) attributes {dimension_semantics = [#tpu.dimension_semantics<parallel>, #tpu.dimension_semantics<arbitrary>], iteration_bounds = array<i64: 1, 2>, scalar_prefetch = 0 : i64, scratch_operands = 1 : i64, tpu.core_type = #tpu.core_type<tc>, window_params = [{transform_indices = @transform_0, window_bounds = array<i64: 2, 8, 32>}, {transform_indices = @transform_1, window_bounds = array<i64: 2, 1, 8>}, {transform_indices = @transform_2, window_bounds = array<i64: 1, 32, 96>}, {transform_indices = @transform_3, window_bounds = array<i64: 1, 1, 96>}, {transform_indices = @transform_4, window_bounds = array<i64: 1, 32, 32>}, {transform_indices = @transform_5, window_bounds = array<i64: 1, 1, 32>}, {transform_indices = @transform_6, window_bounds = array<i64: 1, 1, 32>}, {transform_indices = @transform_7, window_bounds = array<i64: 1, 1, 32>}, {transform_indices = @transform_8, window_bounds = array<i64: 1, 32, 64>}, {transform_indices = @transform_9, window_bounds = array<i64: 1, 1, 64>}, {transform_indices = @transform_10, window_bounds = array<i64: 1, 64, 32>}, {transform_indices = @transform_11, window_bounds = array<i64: 1, 1, 32>}, {transform_indices = @transform_12, window_bounds = array<i64: 1, 1, 32>}, {transform_indices = @transform_13, window_bounds = array<i64: 1, 1, 32>}, {pipeline_mode = #tpu.pipeline_mode<synchronous>, transform_indices = @transform_14, window_bounds = array<i64: 32, 64>}, {pipeline_mode = #tpu.pipeline_mode<synchronous>, transform_indices = @transform_15, window_bounds = array<i64: 1, 64>}, {pipeline_mode = #tpu.pipeline_mode<synchronous>, transform_indices = @transform_16, window_bounds = array<i64: 64, 32>}, {pipeline_mode = #tpu.pipeline_mode<synchronous>, transform_indices = @transform_17, window_bounds = array<i64: 1, 32>}, {transform_indices = @transform_18, window_bounds = array<i64: 2, 1, 32>}]} {
    %c0_i32 = arith.constant 0 : i32
    %0 = arith.cmpi eq, %arg1, %c0_i32 : i32
    %1 = arith.extui %0 : i1 to i32
    %c0_i32_0 = arith.constant 0 : i32
    %2 = arith.cmpi ne, %1, %c0_i32_0 : i32
    scf.if %2 {
      %c0_72 = arith.constant 0 : index
      %c0_73 = arith.constant 0 : index
      %c0_74 = arith.constant 0 : index
      %140 = vector.load %arg2[%c0_72, %c0_73, %c0_74] : memref<2x8x32xf32, #tpu.memory_space<vmem>>, vector<2x8x32xf32>
      %141 = vector.shape_cast %140 : vector<2x8x32xf32> to vector<16x32xf32>
      %c0_75 = arith.constant 0 : index
      %c0_76 = arith.constant 0 : index
      %142 = vector.load %arg21[%c0_75, %c0_76] : memref<16x32xf32, #tpu.memory_space<vmem>>, vector<16x32xf32>
      tpu.vector_store %arg21[%c0_75, %c0_76], %141 {strides = array<i32>} : memref<16x32xf32, #tpu.memory_space<vmem>>, vector<16x32xf32>,
    } else {
    }
    %c0 = arith.constant 0 : index
    %c0_1 = arith.constant 0 : index
    %3 = vector.load %arg21[%c0, %c0_1] : memref<16x32xf32, #tpu.memory_space<vmem>>, vector<16x32xf32>
    %c0_2 = arith.constant 0 : index
    %c0_3 = arith.constant 0 : index
    %c0_4 = arith.constant 0 : index
    %4 = vector.load %arg3[%c0_2, %c0_3, %c0_4] : memref<2x1x8xf32, #tpu.memory_space<vmem>>, vector<2x1x8xf32>
    %c0_5 = arith.constant 0 : index
    %c0_6 = arith.constant 0 : index
    %c0_7 = arith.constant 0 : index
    %5 = vector.load %arg4[%c0_5, %c0_6, %c0_7] : memref<1x32x96xf32, #tpu.memory_space<vmem>>, vector<1x32x96xf32>
    %6 = vector.shape_cast %5 : vector<1x32x96xf32> to vector<32x96xf32>
    %cst = arith.constant dense<0.000000e+00> : vector<16x96xf32>
    %7 = tpu.matmul %3, %6, %cst {dimension_numbers = #tpu.dot_dimension_numbers<[1], [0], [0], [1], [0, 0, 1, 1], [], []>} : vector<16x32xf32>, vector<32x96xf32>, vector<16x96xf32> -> vector<16x96xf32>
    %c0_8 = arith.constant 0 : index
    %c0_9 = arith.constant 0 : index
    %c0_10 = arith.constant 0 : index
    %8 = vector.load %arg5[%c0_8, %c0_9, %c0_10] : memref<1x1x96xf32, #tpu.memory_space<vmem>>, vector<1x1x96xf32>
    %9 = vector.shape_cast %8 : vector<1x1x96xf32> to vector<1x96xf32>
    %10 = vector.broadcast %9 : vector<1x96xf32> to vector<16x96xf32>
    %11 = arith.addf %7, %10 : vector<16x96xf32>
    %12 = vector.shape_cast %11 : vector<16x96xf32> to vector<2x8x96xf32>
    %13 = vector.extract_strided_slice %12 {offsets = [0, 0, 0], sizes = [2, 8, 16], strides = [1, 1, 1]} : vector<2x8x96xf32> to vector<2x8x16xf32>
    %cst_11 = arith.constant 2.500000e-01 : f32
    %14 = vector.broadcast %cst_11 : f32 to vector<2x8x16xf32>
    %15 = arith.mulf %13, %14 : vector<2x8x16xf32>
    %16 = vector.extract_strided_slice %12 {offsets = [0, 0, 32], sizes = [2, 8, 16], strides = [1, 1, 1]} : vector<2x8x96xf32> to vector<2x8x16xf32>
    %17 = vector.extract_strided_slice %12 {offsets = [0, 0, 64], sizes = [2, 8, 16], strides = [1, 1, 1]} : vector<2x8x96xf32> to vector<2x8x16xf32>
    "tpu.trace_start"() <{level = 10 : i32, message = "bqd,bkd->bqk"}> : () -> ()
    %cst_12 = arith.constant dense<0.000000e+00> : vector<2x8x8xf32>
    %18 = tpu.matmul %15, %16, %cst_12 {dimension_numbers = #tpu.dot_dimension_numbers<[2], [2], [1], [1], [0, 0, 0, 1, 1, 1], [0], [0]>} : vector<2x8x16xf32>, vector<2x8x16xf32>, vector<2x8x8xf32> -> vector<2x8x8xf32>
    %cst_13 = arith.constant 0.000000e+00 : f32
    "tpu.trace_stop"() : () -> ()
    %19 = vector.broadcast %cst_13 : f32 to vector<2x1x8xf32>
    %20 = arith.cmpf oeq, %4, %19 : vector<2x1x8xf32>
    %cst_14 = arith.constant -1.000000e+20 : f32
    %21 = vector.shape_cast %20 : vector<2x1x8xi1> to vector<2x1x8xi1>
    %22 = vector.broadcast %21 : vector<2x1x8xi1> to vector<2x8x8xi1>
    %23 = vector.broadcast %cst_14 : f32 to vector<2x8x8xf32>
    %24 = arith.select %22, %23, %18 : vector<2x8x8xi1>, vector<2x8x8xf32>
    %cst_15 = arith.constant dense<0xFF800000> : vector<2x8xf32>
    %25 = vector.multi_reduction <maximumf>, %24, %cst_15 [2] : vector<2x8x8xf32> to vector<2x8xf32>
    %26 = vector.shape_cast %25 : vector<2x8xf32> to vector<2x8x1xf32>
    %27 = vector.broadcast %26 : vector<2x8x1xf32> to vector<2x8x8xf32>
    %28 = arith.subf %24, %27 : vector<2x8x8xf32>
    %29 = math.exp %28 : vector<2x8x8xf32>
    %cst_16 = arith.constant dense<0.000000e+00> : vector<2x8xf32>
    %30 = vector.multi_reduction <add>, %29, %cst_16 [2] : vector<2x8x8xf32> to vector<2x8xf32>
    %31 = vector.shape_cast %30 : vector<2x8xf32> to vector<2x8x1xf32>
    %32 = vector.broadcast %31 : vector<2x8x1xf32> to vector<2x8x8xf32>
    %33 = arith.divf %29, %32 : vector<2x8x8xf32>
    "tpu.trace_start"() <{level = 10 : i32, message = "bqk,bkd->bqd"}> : () -> ()
    %cst_17 = arith.constant dense<0.000000e+00> : vector<2x8x16xf32>
    %34 = tpu.matmul %33, %17, %cst_17 {dimension_numbers = #tpu.dot_dimension_numbers<[2], [1], [1], [2], [0, 0, 0, 1, 1, 2], [0], [0]>} : vector<2x8x8xf32>, vector<2x8x16xf32>, vector<2x8x16xf32> -> vector<2x8x16xf32>
    "tpu.trace_stop"() : () -> ()
    %35 = vector.extract_strided_slice %12 {offsets = [0, 0, 16], sizes = [2, 8, 16], strides = [1, 1, 1]} : vector<2x8x96xf32> to vector<2x8x16xf32>
    %cst_18 = arith.constant 2.500000e-01 : f32
    %36 = vector.broadcast %cst_18 : f32 to vector<2x8x16xf32>
    %37 = arith.mulf %35, %36 : vector<2x8x16xf32>
    %38 = vector.extract_strided_slice %12 {offsets = [0, 0, 48], sizes = [2, 8, 16], strides = [1, 1, 1]} : vector<2x8x96xf32> to vector<2x8x16xf32>
    %39 = vector.extract_strided_slice %12 {offsets = [0, 0, 80], sizes = [2, 8, 16], strides = [1, 1, 1]} : vector<2x8x96xf32> to vector<2x8x16xf32>
    "tpu.trace_start"() <{level = 10 : i32, message = "bqd,bkd->bqk"}> : () -> ()
    %cst_19 = arith.constant dense<0.000000e+00> : vector<2x8x8xf32>
    %40 = tpu.matmul %37, %38, %cst_19 {dimension_numbers = #tpu.dot_dimension_numbers<[2], [2], [1], [1], [0, 0, 0, 1, 1, 1], [0], [0]>} : vector<2x8x16xf32>, vector<2x8x16xf32>, vector<2x8x8xf32> -> vector<2x8x8xf32>
    %cst_20 = arith.constant 0.000000e+00 : f32
    "tpu.trace_stop"() : () -> ()
    %41 = vector.broadcast %cst_20 : f32 to vector<2x1x8xf32>
    %42 = arith.cmpf oeq, %4, %41 : vector<2x1x8xf32>
    %cst_21 = arith.constant -1.000000e+20 : f32
    %43 = vector.shape_cast %42 : vector<2x1x8xi1> to vector<2x1x8xi1>
    %44 = vector.broadcast %43 : vector<2x1x8xi1> to vector<2x8x8xi1>
    %45 = vector.broadcast %cst_21 : f32 to vector<2x8x8xf32>
    %46 = arith.select %44, %45, %40 : vector<2x8x8xi1>, vector<2x8x8xf32>
    %cst_22 = arith.constant dense<0xFF800000> : vector<2x8xf32>
    %47 = vector.multi_reduction <maximumf>, %46, %cst_22 [2] : vector<2x8x8xf32> to vector<2x8xf32>
    %48 = vector.shape_cast %47 : vector<2x8xf32> to vector<2x8x1xf32>
    %49 = vector.broadcast %48 : vector<2x8x1xf32> to vector<2x8x8xf32>
    %50 = arith.subf %46, %49 : vector<2x8x8xf32>
    %51 = math.exp %50 : vector<2x8x8xf32>
    %cst_23 = arith.constant dense<0.000000e+00> : vector<2x8xf32>
    %52 = vector.multi_reduction <add>, %51, %cst_23 [2] : vector<2x8x8xf32> to vector<2x8xf32>
    %53 = vector.shape_cast %52 : vector<2x8xf32> to vector<2x8x1xf32>
    %54 = vector.broadcast %53 : vector<2x8x1xf32> to vector<2x8x8xf32>
    %55 = arith.divf %51, %54 : vector<2x8x8xf32>
    "tpu.trace_start"() <{level = 10 : i32, message = "bqk,bkd->bqd"}> : () -> ()
    %cst_24 = arith.constant dense<0.000000e+00> : vector<2x8x16xf32>
    %56 = tpu.matmul %55, %39, %cst_24 {dimension_numbers = #tpu.dot_dimension_numbers<[2], [1], [1], [2], [0, 0, 0, 1, 1, 2], [0], [0]>} : vector<2x8x8xf32>, vector<2x8x16xf32>, vector<2x8x16xf32> -> vector<2x8x16xf32>
    "tpu.trace_stop"() : () -> ()
    %57 = tpu.concatenate %34, %56 in 2 : vector<2x8x16xf32>, vector<2x8x16xf32> -> vector<2x8x32xf32>
    %58 = vector.shape_cast %57 : vector<2x8x32xf32> to vector<16x32xf32>
    %c0_25 = arith.constant 0 : index
    %c0_26 = arith.constant 0 : index
    %c0_27 = arith.constant 0 : index
    %59 = vector.load %arg6[%c0_25, %c0_26, %c0_27] : memref<1x32x32xf32, #tpu.memory_space<vmem>>, vector<1x32x32xf32>
    %60 = vector.shape_cast %59 : vector<1x32x32xf32> to vector<32x32xf32>
    %cst_28 = arith.constant dense<0.000000e+00> : vector<16x32xf32>
    %61 = tpu.matmul %58, %60, %cst_28 {dimension_numbers = #tpu.dot_dimension_numbers<[1], [0], [0], [1], [0, 0, 1, 1], [], []>} : vector<16x32xf32>, vector<32x32xf32>, vector<16x32xf32> -> vector<16x32xf32>
    %c0_29 = arith.constant 0 : index
    %c0_30 = arith.constant 0 : index
    %c0_31 = arith.constant 0 : index
    %62 = vector.load %arg7[%c0_29, %c0_30, %c0_31] : memref<1x1x32xf32, #tpu.memory_space<vmem>>, vector<1x1x32xf32>
    %63 = vector.shape_cast %62 : vector<1x1x32xf32> to vector<1x32xf32>
    %64 = vector.broadcast %63 : vector<1x32xf32> to vector<16x32xf32>
    %65 = arith.addf %61, %64 : vector<16x32xf32>
    %66 = arith.addf %3, %65 : vector<16x32xf32>
    %c0_32 = arith.constant 0 : index
    %c0_33 = arith.constant 0 : index
    %c0_34 = arith.constant 0 : index
    %67 = vector.load %arg8[%c0_32, %c0_33, %c0_34] : memref<1x1x32xf32, #tpu.memory_space<vmem>>, vector<1x1x32xf32>
    %68 = vector.shape_cast %67 : vector<1x1x32xf32> to vector<1x32xf32>
    %c0_35 = arith.constant 0 : index
    %c0_36 = arith.constant 0 : index
    %c0_37 = arith.constant 0 : index
    %69 = vector.load %arg9[%c0_35, %c0_36, %c0_37] : memref<1x1x32xf32, #tpu.memory_space<vmem>>, vector<1x1x32xf32>
    %70 = vector.shape_cast %69 : vector<1x1x32xf32> to vector<1x32xf32>
    %cst_38 = arith.constant dense<0.000000e+00> : vector<16xf32>
    %71 = vector.multi_reduction <add>, %66, %cst_38 [1] : vector<16x32xf32> to vector<16xf32>
    %72 = vector.shape_cast %71 : vector<16xf32> to vector<16x1xf32>
    %cst_39 = arith.constant 3.200000e+01 : f32
    %73 = vector.broadcast %cst_39 : f32 to vector<16x1xf32>
    %74 = arith.divf %72, %73 : vector<16x1xf32>
    %75 = vector.broadcast %74 : vector<16x1xf32> to vector<16x32xf32>
    %76 = arith.subf %66, %75 : vector<16x32xf32>
    %77 = arith.mulf %76, %76 : vector<16x32xf32>
    %cst_40 = arith.constant dense<0.000000e+00> : vector<16xf32>
    %78 = vector.multi_reduction <add>, %77, %cst_40 [1] : vector<16x32xf32> to vector<16xf32>
    %79 = vector.shape_cast %78 : vector<16xf32> to vector<16x1xf32>
    %cst_41 = arith.constant 3.200000e+01 : f32
    %80 = vector.broadcast %cst_41 : f32 to vector<16x1xf32>
    %81 = arith.divf %79, %80 : vector<16x1xf32>
    %82 = vector.broadcast %74 : vector<16x1xf32> to vector<16x32xf32>
    %83 = arith.subf %66, %82 : vector<16x32xf32>
    %cst_42 = arith.constant 9.99999974E-6 : f32
    %84 = vector.broadcast %cst_42 : f32 to vector<16x1xf32>
    %85 = arith.addf %81, %84 : vector<16x1xf32>
    %86 = math.rsqrt %85 : vector<16x1xf32>
    %87 = vector.broadcast %86 : vector<16x1xf32> to vector<16x32xf32>
    %88 = arith.mulf %83, %87 : vector<16x32xf32>
    %89 = vector.broadcast %68 : vector<1x32xf32> to vector<16x32xf32>
    %90 = arith.mulf %88, %89 : vector<16x32xf32>
    %91 = vector.broadcast %70 : vector<1x32xf32> to vector<16x32xf32>
    %92 = arith.addf %90, %91 : vector<16x32xf32>
    %c0_43 = arith.constant 0 : index
    %c0_44 = arith.constant 0 : index
    %c0_45 = arith.constant 0 : index
    %93 = vector.load %arg10[%c0_43, %c0_44, %c0_45] : memref<1x32x64xf32, #tpu.memory_space<vmem>>, vector<1x32x64xf32>
    %94 = vector.shape_cast %93 : vector<1x32x64xf32> to vector<32x64xf32>
    %cst_46 = arith.constant dense<0.000000e+00> : vector<16x64xf32>
    %95 = tpu.matmul %92, %94, %cst_46 {dimension_numbers = #tpu.dot_dimension_numbers<[1], [0], [0], [1], [0, 0, 1, 1], [], []>} : vector<16x32xf32>, vector<32x64xf32>, vector<16x64xf32> -> vector<16x64xf32>
    %c0_47 = arith.constant 0 : index
    %c0_48 = arith.constant 0 : index
    %c0_49 = arith.constant 0 : index
    %96 = vector.load %arg11[%c0_47, %c0_48, %c0_49] : memref<1x1x64xf32, #tpu.memory_space<vmem>>, vector<1x1x64xf32>
    %97 = vector.shape_cast %96 : vector<1x1x64xf32> to vector<1x64xf32>
    %98 = vector.broadcast %97 : vector<1x64xf32> to vector<16x64xf32>
    %99 = arith.addf %95, %98 : vector<16x64xf32>
    %cst_50 = arith.constant 0.000000e+00 : f32
    %100 = vector.broadcast %cst_50 : f32 to vector<16x64xf32>
    %101 = arith.maximumf %99, %100 : vector<16x64xf32>
    %c0_51 = arith.constant 0 : index
    %c0_52 = arith.constant 0 : index
    %c0_53 = arith.constant 0 : index
    %102 = vector.load %arg12[%c0_51, %c0_52, %c0_53] : memref<1x64x32xf32, #tpu.memory_space<vmem>>, vector<1x64x32xf32>
    %103 = vector.shape_cast %102 : vector<1x64x32xf32> to vector<64x32xf32>
    %cst_54 = arith.constant dense<0.000000e+00> : vector<16x32xf32>
    %104 = tpu.matmul %101, %103, %cst_54 {dimension_numbers = #tpu.dot_dimension_numbers<[1], [0], [0], [1], [0, 0, 1, 1], [], []>} : vector<16x64xf32>, vector<64x32xf32>, vector<16x32xf32> -> vector<16x32xf32>
    %c0_55 = arith.constant 0 : index
    %c0_56 = arith.constant 0 : index
    %c0_57 = arith.constant 0 : index
    %105 = vector.load %arg13[%c0_55, %c0_56, %c0_57] : memref<1x1x32xf32, #tpu.memory_space<vmem>>, vector<1x1x32xf32>
    %106 = vector.shape_cast %105 : vector<1x1x32xf32> to vector<1x32xf32>
    %107 = vector.broadcast %106 : vector<1x32xf32> to vector<16x32xf32>
    %108 = arith.addf %104, %107 : vector<16x32xf32>
    %109 = arith.addf %92, %108 : vector<16x32xf32>
    %c0_58 = arith.constant 0 : index
    %c0_59 = arith.constant 0 : index
    %c0_60 = arith.constant 0 : index
    %110 = vector.load %arg14[%c0_58, %c0_59, %c0_60] : memref<1x1x32xf32, #tpu.memory_space<vmem>>, vector<1x1x32xf32>
    %111 = vector.shape_cast %110 : vector<1x1x32xf32> to vector<1x32xf32>
    %c0_61 = arith.constant 0 : index
    %c0_62 = arith.constant 0 : index
    %c0_63 = arith.constant 0 : index
    %112 = vector.load %arg15[%c0_61, %c0_62, %c0_63] : memref<1x1x32xf32, #tpu.memory_space<vmem>>, vector<1x1x32xf32>
    %113 = vector.shape_cast %112 : vector<1x1x32xf32> to vector<1x32xf32>
    %cst_64 = arith.constant dense<0.000000e+00> : vector<16xf32>
    %114 = vector.multi_reduction <add>, %109, %cst_64 [1] : vector<16x32xf32> to vector<16xf32>
    %115 = vector.shape_cast %114 : vector<16xf32> to vector<16x1xf32>
    %cst_65 = arith.constant 3.200000e+01 : f32
    %116 = vector.broadcast %cst_65 : f32 to vector<16x1xf32>
    %117 = arith.divf %115, %116 : vector<16x1xf32>
    %118 = vector.broadcast %117 : vector<16x1xf32> to vector<16x32xf32>
    %119 = arith.subf %109, %118 : vector<16x32xf32>
    %120 = arith.mulf %119, %119 : vector<16x32xf32>
    %cst_66 = arith.constant dense<0.000000e+00> : vector<16xf32>
    %121 = vector.multi_reduction <add>, %120, %cst_66 [1] : vector<16x32xf32> to vector<16xf32>
    %122 = vector.shape_cast %121 : vector<16xf32> to vector<16x1xf32>
    %cst_67 = arith.constant 3.200000e+01 : f32
    %123 = vector.broadcast %cst_67 : f32 to vector<16x1xf32>
    %124 = arith.divf %122, %123 : vector<16x1xf32>
    %125 = vector.broadcast %117 : vector<16x1xf32> to vector<16x32xf32>
    %126 = arith.subf %109, %125 : vector<16x32xf32>
    %cst_68 = arith.constant 9.99999974E-6 : f32
    %127 = vector.broadcast %cst_68 : f32 to vector<16x1xf32>
    %128 = arith.addf %124, %127 : vector<16x1xf32>
    %129 = math.rsqrt %128 : vector<16x1xf32>
    %130 = vector.broadcast %129 : vector<16x1xf32> to vector<16x32xf32>
    %131 = arith.mulf %126, %130 : vector<16x32xf32>
    %132 = vector.broadcast %111 : vector<1x32xf32> to vector<16x32xf32>
    %133 = arith.mulf %131, %132 : vector<16x32xf32>
    %134 = vector.broadcast %113 : vector<1x32xf32> to vector<16x32xf32>
    %135 = arith.addf %133, %134 : vector<16x32xf32>
    %c0_69 = arith.constant 0 : index
    %c0_70 = arith.constant 0 : index
    %136 = vector.load %arg21[%c0_69, %c0_70] : memref<16x32xf32, #tpu.memory_space<vmem>>, vector<16x32xf32>
    tpu.vector_store %arg21[%c0_69, %c0_70], %135 {strides = array<i32>} : memref<16x32xf32, #tpu.memory_space<vmem>>, vector<16x32xf32>,
    %c1_i32 = arith.constant 1 : i32
    %137 = arith.cmpi eq, %arg1, %c1_i32 : i32
    %138 = arith.extui %137 : i1 to i32
    %c0_i32_71 = arith.constant 0 : i32
    %139 = arith.cmpi ne, %138, %c0_i32_71 : i32
    scf.if %139 {
      %140 = vector.shape_cast %135 : vector<16x32xf32> to vector<2x8x32xf32>
      %cst_72 = arith.constant dense<0.000000e+00> : vector<2x1xf32>
      %141 = vector.multi_reduction <add>, %4, %cst_72 [2] : vector<2x1x8xf32> to vector<2x1xf32>
      %142 = vector.shape_cast %141 : vector<2x1xf32> to vector<2x1x1xf32>
      %cst_73 = arith.constant 1.000000e+00 : f32
      %143 = vector.broadcast %cst_73 : f32 to vector<2x1x1xf32>
      %144 = arith.maximumf %142, %143 : vector<2x1x1xf32>
      "tpu.trace_start"() <{level = 10 : i32, message = "bos,bsd->bod"}> : () -> ()
      %cst_74 = arith.constant dense<0.000000e+00> : vector<2x1x32xf32>
      %145 = tpu.matmul %4, %140, %cst_74 {dimension_numbers = #tpu.dot_dimension_numbers<[2], [1], [1], [2], [0, 0, 0, 1, 1, 2], [0], [0]>} : vector<2x1x8xf32>, vector<2x8x32xf32>, vector<2x1x32xf32> -> vector<2x1x32xf32>
      "tpu.trace_stop"() : () -> ()
      %cst_75 = arith.constant 1.000000e+00 : f32
      %146 = vector.broadcast %cst_75 : f32 to vector<2x1x1xf32>
      %147 = arith.divf %146, %144 : vector<2x1x1xf32>
      %148 = vector.broadcast %147 : vector<2x1x1xf32> to vector<2x1x32xf32>
      %149 = arith.mulf %145, %148 : vector<2x1x32xf32>
      %150 = vector.shape_cast %149 : vector<2x1x32xf32> to vector<2x32xf32>
      %c0_76 = arith.constant 0 : index
      %c0_77 = arith.constant 0 : index
      %151 = vector.load %arg16[%c0_76, %c0_77] : memref<32x64xf32, #tpu.memory_space<vmem>>, vector<32x64xf32>
      %cst_78 = arith.constant dense<0.000000e+00> : vector<2x64xf32>
      %152 = tpu.matmul %150, %151, %cst_78 {dimension_numbers = #tpu.dot_dimension_numbers<[1], [0], [0], [1], [0, 0, 1, 1], [], []>} : vector<2x32xf32>, vector<32x64xf32>, vector<2x64xf32> -> vector<2x64xf32>
      %c0_79 = arith.constant 0 : index
      %c0_80 = arith.constant 0 : index
      %153 = vector.load %arg17[%c0_79, %c0_80] : memref<1x64xf32, #tpu.memory_space<vmem>>, vector<1x64xf32>
      %154 = vector.broadcast %153 : vector<1x64xf32> to vector<2x64xf32>
      %155 = arith.addf %152, %154 : vector<2x64xf32>
      %cst_81 = arith.constant 0.000000e+00 : f32
      %156 = vector.broadcast %cst_81 : f32 to vector<2x64xf32>
      %157 = arith.maximumf %155, %156 : vector<2x64xf32>
      %c0_82 = arith.constant 0 : index
      %c0_83 = arith.constant 0 : index
      %158 = vector.load %arg18[%c0_82, %c0_83] : memref<64x32xf32, #tpu.memory_space<vmem>>, vector<64x32xf32>
      %cst_84 = arith.constant dense<0.000000e+00> : vector<2x32xf32>
      %159 = tpu.matmul %157, %158, %cst_84 {dimension_numbers = #tpu.dot_dimension_numbers<[1], [0], [0], [1], [0, 0, 1, 1], [], []>} : vector<2x64xf32>, vector<64x32xf32>, vector<2x32xf32> -> vector<2x32xf32>
      %c0_85 = arith.constant 0 : index
      %c0_86 = arith.constant 0 : index
      %160 = vector.load %arg19[%c0_85, %c0_86] : memref<1x32xf32, #tpu.memory_space<vmem>>, vector<1x32xf32>
      %161 = vector.broadcast %160 : vector<1x32xf32> to vector<2x32xf32>
      %162 = arith.addf %159, %161 : vector<2x32xf32>
      %163 = vector.shape_cast %162 : vector<2x32xf32> to vector<2x1x32xf32>
      %c0_87 = arith.constant 0 : index
      %c0_88 = arith.constant 0 : index
      %c0_89 = arith.constant 0 : index
      %164 = vector.load %arg20[%c0_87, %c0_88, %c0_89] : memref<2x1x32xf32, #tpu.memory_space<vmem>>, vector<2x1x32xf32>
      tpu.vector_store %arg20[%c0_87, %c0_88, %c0_89], %163 {strides = array<i32>} : memref<2x1x32xf32, #tpu.memory_space<vmem>>, vector<2x1x32xf32>,
    } else {
    }
    return
  }
  func.func @transform_0(%arg0: i32, %arg1: i32) -> (i32, i32, i32) {
    %c0_i32 = arith.constant 0 : i32
    %c0_i32_0 = arith.constant 0 : i32
    %c0_i32_1 = arith.constant 0 : i32
    return %arg0, %c0_i32, %c0_i32_0 : i32, i32, i32
  }
  func.func @transform_1(%arg0: i32, %arg1: i32) -> (i32, i32, i32) {
    %c0_i32 = arith.constant 0 : i32
    %c0_i32_0 = arith.constant 0 : i32
    %c0_i32_1 = arith.constant 0 : i32
    return %arg0, %c0_i32, %c0_i32_0 : i32, i32, i32
  }
  func.func @transform_2(%arg0: i32, %arg1: i32) -> (i32, i32, i32) {
    %c0_i32 = arith.constant 0 : i32
    %c0_i32_0 = arith.constant 0 : i32
    %c0_i32_1 = arith.constant 0 : i32
    return %arg1, %c0_i32, %c0_i32_0 : i32, i32, i32
  }
  func.func @transform_3(%arg0: i32, %arg1: i32) -> (i32, i32, i32) {
    %c0_i32 = arith.constant 0 : i32
    %c0_i32_0 = arith.constant 0 : i32
    %c0_i32_1 = arith.constant 0 : i32
    return %arg1, %c0_i32, %c0_i32_0 : i32, i32, i32
  }
  func.func @transform_4(%arg0: i32, %arg1: i32) -> (i32, i32, i32) {
    %c0_i32 = arith.constant 0 : i32
    %c0_i32_0 = arith.constant 0 : i32
    %c0_i32_1 = arith.constant 0 : i32
    return %arg1, %c0_i32, %c0_i32_0 : i32, i32, i32
  }
  func.func @transform_5(%arg0: i32, %arg1: i32) -> (i32, i32, i32) {
    %c0_i32 = arith.constant 0 : i32
    %c0_i32_0 = arith.constant 0 : i32
    %c0_i32_1 = arith.constant 0 : i32
    return %arg1, %c0_i32, %c0_i32_0 : i32, i32, i32
  }
  func.func @transform_6(%arg0: i32, %arg1: i32) -> (i32, i32, i32) {
    %c0_i32 = arith.constant 0 : i32
    %c0_i32_0 = arith.constant 0 : i32
    %c0_i32_1 = arith.constant 0 : i32
    return %arg1, %c0_i32, %c0_i32_0 : i32, i32, i32
  }
  func.func @transform_7(%arg0: i32, %arg1: i32) -> (i32, i32, i32) {
    %c0_i32 = arith.constant 0 : i32
    %c0_i32_0 = arith.constant 0 : i32
    %c0_i32_1 = arith.constant 0 : i32
    return %arg1, %c0_i32, %c0_i32_0 : i32, i32, i32
  }
  func.func @transform_8(%arg0: i32, %arg1: i32) -> (i32, i32, i32) {
    %c0_i32 = arith.constant 0 : i32
    %c0_i32_0 = arith.constant 0 : i32
    %c0_i32_1 = arith.constant 0 : i32
    return %arg1, %c0_i32, %c0_i32_0 : i32, i32, i32
  }
  func.func @transform_9(%arg0: i32, %arg1: i32) -> (i32, i32, i32) {
    %c0_i32 = arith.constant 0 : i32
    %c0_i32_0 = arith.constant 0 : i32
    %c0_i32_1 = arith.constant 0 : i32
    return %arg1, %c0_i32, %c0_i32_0 : i32, i32, i32
  }
  func.func @transform_10(%arg0: i32, %arg1: i32) -> (i32, i32, i32) {
    %c0_i32 = arith.constant 0 : i32
    %c0_i32_0 = arith.constant 0 : i32
    %c0_i32_1 = arith.constant 0 : i32
    return %arg1, %c0_i32, %c0_i32_0 : i32, i32, i32
  }
  func.func @transform_11(%arg0: i32, %arg1: i32) -> (i32, i32, i32) {
    %c0_i32 = arith.constant 0 : i32
    %c0_i32_0 = arith.constant 0 : i32
    %c0_i32_1 = arith.constant 0 : i32
    return %arg1, %c0_i32, %c0_i32_0 : i32, i32, i32
  }
  func.func @transform_12(%arg0: i32, %arg1: i32) -> (i32, i32, i32) {
    %c0_i32 = arith.constant 0 : i32
    %c0_i32_0 = arith.constant 0 : i32
    %c0_i32_1 = arith.constant 0 : i32
    return %arg1, %c0_i32, %c0_i32_0 : i32, i32, i32
  }
  func.func @transform_13(%arg0: i32, %arg1: i32) -> (i32, i32, i32) {
    %c0_i32 = arith.constant 0 : i32
    %c0_i32_0 = arith.constant 0 : i32
    %c0_i32_1 = arith.constant 0 : i32
    return %arg1, %c0_i32, %c0_i32_0 : i32, i32, i32
  }
  func.func @transform_14(%arg0: i32, %arg1: i32) -> (i32, i32) {
    %c0_i32 = arith.constant 0 : i32
    %c0_i32_0 = arith.constant 0 : i32
    %c0_i32_1 = arith.constant 0 : i32
    return %c0_i32, %c0_i32_0 : i32, i32
  }
  func.func @transform_15(%arg0: i32, %arg1: i32) -> (i32, i32) {
    %c0_i32 = arith.constant 0 : i32
    %c0_i32_0 = arith.constant 0 : i32
    %c0_i32_1 = arith.constant 0 : i32
    return %c0_i32, %c0_i32_0 : i32, i32
  }
  func.func @transform_16(%arg0: i32, %arg1: i32) -> (i32, i32) {
    %c0_i32 = arith.constant 0 : i32
    %c0_i32_0 = arith.constant 0 : i32
    %c0_i32_1 = arith.constant 0 : i32
    return %c0_i32, %c0_i32_0 : i32, i32
  }
  func.func @transform_17(%arg0: i32, %arg1: i32) -> (i32, i32) {
    %c0_i32 = arith.constant 0 : i32
    %c0_i32_0 = arith.constant 0 : i32
    %c0_i32_1 = arith.constant 0 : i32
    return %c0_i32, %c0_i32_0 : i32, i32
  }
  func.func @transform_18(%arg0: i32, %arg1: i32) -> (i32, i32, i32) {
    %c0_i32 = arith.constant 0 : i32
    %c0_i32_0 = arith.constant 0 : i32
    %c0_i32_1 = arith.constant 0 : i32
    return %arg0, %c0_i32, %c0_i32_0 : i32, i32, i32
  }
}

</mosaic_0001>

<llo_original>
// kernel: tpu_custom_call.1
$region0: #{tpu_custom_call.1}
  #allocation0 [shape = 'u32[]', space=smem, size = 0x4, offset = 0x4, fixed_abs, tag = 'smem constant byte address 0x4 - core index']
  #allocation1 [shape = 'u32[144,128]{1,0:T(1,128)}', space=vmem, size = 0x12000, scoped, tag = 'internal scratch']
  #allocation2 [shape = 'f32[16,32]{1,0:T(8,128)}', space=vmem, size = 0x2000, scoped, tag = 'scratch operand']
  %s0 = inlined_call_operand.vmem [shape: f32[2,8,32], index: 0, kind: input, shape index: {}]
  %s1 = inlined_call_operand.vmem [shape: f32[2,1,8], index: 1, kind: input, shape index: {}]
  %s2 = inlined_call_operand.vmem [shape: f32[2,32,96], index: 2, kind: input, shape index: {}]
  %s3 = inlined_call_operand.vmem [shape: f32[2,1,96], index: 3, kind: input, shape index: {}]
  %s4 = inlined_call_operand.vmem [shape: f32[2,32,32], index: 4, kind: input, shape index: {}]
  %s5 = inlined_call_operand.vmem [shape: f32[2,1,32], index: 5, kind: input, shape index: {}]
  %s6 = inlined_call_operand.vmem [shape: f32[2,1,32], index: 6, kind: input, shape index: {}]
  %s7 = inlined_call_operand.vmem [shape: f32[2,1,32], index: 7, kind: input, shape index: {}]
  %s8 = inlined_call_operand.vmem [shape: f32[2,32,64], index: 8, kind: input, shape index: {}]
  %s9 = inlined_call_operand.vmem [shape: f32[2,1,64], index: 9, kind: input, shape index: {}]
  %s10 = inlined_call_operand.vmem [shape: f32[2,64,32], index: 10, kind: input, shape index: {}]
  %s11 = inlined_call_operand.hbm [shape: f32[2,1,32], index: 11, kind: input, shape index: {}]
  %s12 = inlined_call_operand.hbm [shape: f32[2,1,32], index: 12, kind: input, shape index: {}]
  %s13 = inlined_call_operand.hbm [shape: f32[2,1,32], index: 13, kind: input, shape index: {}]
  %s14 = inlined_call_operand.vmem [shape: f32[32,64], index: 14, kind: input, shape index: {}]
  %s15 = inlined_call_operand.hbm [shape: f32[1,64], index: 15, kind: input, shape index: {}]
  %s16 = inlined_call_operand.vmem [shape: f32[64,32], index: 16, kind: input, shape index: {}]
  %s17 = inlined_call_operand.vmem [shape: f32[1,32], index: 17, kind: input, shape index: {}]
  %s18 = inlined_call_operand.hbm [shape: f32[2,1,32], index: 18, kind: output, shape index: {}]
  %s19 = sld [smem:[#allocation0]]
  $region129: #{tpu_custom_call.1} parent=0
    _
  %s21 = ssub.s32 1, %s19
  %s22 = scalar_select 0, %s21, %s19
  $region1: #{tpu_custom_call.1} parent=0
    #allocation3 [shape = 'u8[1024]{0}', space=vmem, size = 0x400, scoped, tag = 'input window, operand 11']
    #allocation4 [shape = 's32[2]{0}', space=sflag, size = 0x8, scoped, tag = 'scoped memory for tpu_custom_call.1']
    #allocation5 [shape = 's32[2]{0}', space=sflag, size = 0x8, scoped, tag = 'scoped memory for tpu_custom_call.1']
    #allocation6 [shape = 'u8[1024]{0}', space=vmem, size = 0x400, scoped, tag = 'input window, operand 12']
    #allocation7 [shape = 's32[2]{0}', space=sflag, size = 0x8, scoped, tag = 'scoped memory for tpu_custom_call.1']
    #allocation8 [shape = 'u8[1024]{0}', space=vmem, size = 0x400, scoped, tag = 'input window, operand 13']
    #allocation9 [shape = 'u8[512]{0}', space=vmem, size = 0x400, scoped, tag = 'input window, operand 15, single buffered']
    #allocation10 [shape = 's32[1]{0}', space=sflag, size = 0x4, scoped, tag = 'scoped memory for tpu_custom_call.1']
    #allocation11 [shape = 'u8[1024]{0}', space=vmem, size = 0x400, scoped, tag = 'output window, operand 0, single buffered']
    %23 = vsyncpa [#allocation4], 0
    %s24 = scalar_lea.sflag [#allocation4], 1
    %25 = vsyncpa %s24, 0
    %26 = vsyncpa [#allocation7], 0
    %s27 = scalar_lea.sflag [#allocation7], 1
    %28 = vsyncpa %s27, 0
    %29 = vsyncpa [#allocation10], 0
    %30 = vsyncpa [#allocation5], 0
    loop: start=0, step=1, limit=4
    $region2: #{tpu_custom_call.1} parent=1 // loop_pre_header
      _
    $region3: #{tpu_custom_call.1} parent=1 // loop_header
      %s32 = sphi 0, %s36
      %p33 = scmp.ge.s32.totalorder %s32, 4
      %s39 = sphi 0, %s51
      %s40 = sphi 0, %s47
      %s41 = sphi 0, %s39
      %s42 = sphi 0, %s40
      %s43 = sphi 0, %s41
      %s44 = sphi 0, %s42
      %s54 = sphi 0, %s56
      %s57 = sphi 0, %s54
      %s58 = sphi 0, %s57
      %s74 = sphi 0, %s58
      %s80 = sphi 0, %s82
      %s83 = sphi 0, %s80
      %s84 = sphi 0, %s83
      %s100 = sphi 0, %s84
      %s106 = sphi 0, %s108
      %s109 = sphi 0, %s106
      %s110 = sphi 0, %s109
      %s126 = sphi 0, %s110
      %s132 = sphi 0, %s134
      %s135 = sphi 0, %s132
      %s136 = sphi 0, %s135
      %s152 = sphi 0, %s136
      %s158 = sphi 0, %s160
      %s161 = sphi 0, %s158
      %s162 = sphi 0, %s161
      %s178 = sphi 0, %s162
      %s184 = sphi 0, %s186
      %s187 = sphi 0, %s184
      %s188 = sphi 0, %s187
      %s204 = sphi 0, %s188
      %s210 = sphi 0, %s212
      %s213 = sphi 0, %s210
      %s214 = sphi 0, %s213
      %s230 = sphi 0, %s214
      %s236 = sphi 0, %s238
      %s239 = sphi 0, %s236
      %s240 = sphi 0, %s239
      %s256 = sphi 0, %s240
      %s262 = sphi 0, %s264
      %s265 = sphi 0, %s262
      %s266 = sphi 0, %s265
      %s282 = sphi 0, %s266
      %s288 = sphi 0, %s290
      %s291 = sphi 0, %s288
      %s292 = sphi 0, %s291
      %s308 = sphi 0, %s292
      %s314 = sphi 0, %s316
      %s317 = sphi 0, %s314
      %s318 = sphi 0, %s317
      %s334 = sphi 0, %s318
      %s340 = sphi 0, %s342
      %s343 = sphi 0, %s340
      %s344 = sphi 0, %s343
      %s360 = sphi 0, %s344
      %s366 = sphi 0, %s368
      %s369 = sphi 0, %s366
      %s370 = sphi 0, %s369
      %s386 = sphi 0, %s370
      %s392 = sphi 0, %s394
      %s395 = sphi 0, %s392
      %s396 = sphi 0, %s395
      %s412 = sphi 0, %s396
      %s416 = sphi 0, %s416
      %s418 = sphi 0, %s416
      %s419 = sphi 0, %s418
      %s433 = sphi 0, %s419
      %s437 = sphi 0, %s437
      %s439 = sphi 0, %s437
      %s440 = sphi 0, %s439
      %s454 = sphi 0, %s440
      %s458 = sphi 0, %s458
      %s460 = sphi 0, %s458
      %s461 = sphi 0, %s460
      %s475 = sphi 0, %s461
      %s479 = sphi 0, %s479
      %s481 = sphi 0, %s479
      %s482 = sphi 0, %s481
      %s496 = sphi 0, %s482
      %s502 = sphi 0, %s504
      %s505 = sphi 0, %s502
      %s506 = sphi 0, %s505
      %s522 = sphi 0, %s506
    $region4: #{tpu_custom_call.1} parent=1 // loop_header_branch
      %35 = sbr.rel (%p33) target = $region8
    $region5: #{tpu_custom_call.1} parent=1 // loop_body
      %s37 = ssub.s32 %s32, 1
      %s38 = ssub.s32 %s32, 2
      %s45 = sadd.s32 1, %s40
      %p46 = scmp.ge.s32.totalorder %s45, 2
      %s47 = scalar_select %p46, 0, %s45
      %s48 = sadd.s32 1, %s39
      %s49 = scalar_select %p46, %s48, %s39
      %p50 = scmp.ge.s32.totalorder %s49, 1
      %s51 = scalar_select %p50, 0, %s49
      %s52 = ssub.s32 %s39, %s51
      %p53 = scmp.eq.s32.totalorder %s52, 0
      %s55 = sadd.s32 %s54, 1
      %s56 = scalar_select %p53, %s54, %s55
      %p59 = pneg %p53
      %p60 = scmp.eq.s32.totalorder %s32, 1
      %p61 = por %p59, %p60
      %p62 = scmp.ne.s32.totalorder %s54, %s57
      %p63 = scmp.eq.s32.totalorder %s32, 0
      %p64 = por %p62, %p63
      %p65 = scmp.ne.s32.totalorder %s54, %s57
      %p66 = scmp.eq.s32.totalorder %s37, 1
      %p67 = por %p65, %p66
      %p68 = scmp.ne.s32.totalorder %s57, %s58
      %p69 = scmp.eq.s32.totalorder %s37, 0
      %p70 = por %p68, %p69
      %p71 = scmp.ne.s32.totalorder %s57, %s58
      %p72 = scmp.eq.s32.totalorder %s38, 1
      %p73 = por %p71, %p72
      %p75 = scmp.ne.s32.totalorder %s58, %s74
      %p76 = scmp.eq.s32.totalorder %s38, 0
      %p77 = por %p75, %p76
      %s78 = ssub.s32 %s39, %s51
      %p79 = scmp.eq.s32.totalorder %s78, 0
      %s81 = sadd.s32 %s80, 1
      %s82 = scalar_select %p79, %s80, %s81
      %p85 = pneg %p79
      %p86 = scmp.eq.s32.totalorder %s32, 1
      %p87 = por %p85, %p86
      %p88 = scmp.ne.s32.totalorder %s80, %s83
      %p89 = scmp.eq.s32.totalorder %s32, 0
      %p90 = por %p88, %p89
      %p91 = scmp.ne.s32.totalorder %s80, %s83
      %p92 = scmp.eq.s32.totalorder %s37, 1
      %p93 = por %p91, %p92
      %p94 = scmp.ne.s32.totalorder %s83, %s84
      %p95 = scmp.eq.s32.totalorder %s37, 0
      %p96 = por %p94, %p95
      %p97 = scmp.ne.s32.totalorder %s83, %s84
      %p98 = scmp.eq.s32.totalorder %s38, 1
      %p99 = por %p97, %p98
      %p101 = scmp.ne.s32.totalorder %s84, %s100
      %p102 = scmp.eq.s32.totalorder %s38, 0
      %p103 = por %p101, %p102
      %s104 = ssub.s32 %s40, %s47
      %p105 = scmp.eq.s32.totalorder %s104, 0
      %s107 = sadd.s32 %s106, 1
      %s108 = scalar_select %p105, %s106, %s107
      %p111 = pneg %p105
      %p112 = scmp.eq.s32.totalorder %s32, 1
      %p113 = por %p111, %p112
      %p114 = scmp.ne.s32.totalorder %s106, %s109
      %p115 = scmp.eq.s32.totalorder %s32, 0
      %p116 = por %p114, %p115
      %p117 = scmp.ne.s32.totalorder %s106, %s109
      %p118 = scmp.eq.s32.totalorder %s37, 1
      %p119 = por %p117, %p118
      %p120 = scmp.ne.s32.totalorder %s109, %s110
      %p121 = scmp.eq.s32.totalorder %s37, 0
      %p122 = por %p120, %p121
      %p123 = scmp.ne.s32.totalorder %s109, %s110
      %p124 = scmp.eq.s32.totalorder %s38, 1
      %p125 = por %p123, %p124
      %p127 = scmp.ne.s32.totalorder %s110, %s126
      %p128 = scmp.eq.s32.totalorder %s38, 0
      %p129 = por %p127, %p128
      %s130 = ssub.s32 %s40, %s47
      %p131 = scmp.eq.s32.totalorder %s130, 0
      %s133 = sadd.s32 %s132, 1
      %s134 = scalar_select %p131, %s132, %s133
      %p137 = pneg %p131
      %p138 = scmp.eq.s32.totalorder %s32, 1
      %p139 = por %p137, %p138
      %p140 = scmp.ne.s32.totalorder %s132, %s135
      %p141 = scmp.eq.s32.totalorder %s32, 0
      %p142 = por %p140, %p141
      %p143 = scmp.ne.s32.totalorder %s132, %s135
      %p144 = scmp.eq.s32.totalorder %s37, 1
      %p145 = por %p143, %p144
      %p146 = scmp.ne.s32.totalorder %s135, %s136
      %p147 = scmp.eq.s32.totalorder %s37, 0
      %p148 = por %p146, %p147
      %p149 = scmp.ne.s32.totalorder %s135, %s136
      %p150 = scmp.eq.s32.totalorder %s38, 1
      %p151 = por %p149, %p150
      %p153 = scmp.ne.s32.totalorder %s136, %s152
      %p154 = scmp.eq.s32.totalorder %s38, 0
      %p155 = por %p153, %p154
      %s156 = ssub.s32 %s40, %s47
      %p157 = scmp.eq.s32.totalorder %s156, 0
      %s159 = sadd.s32 %s158, 1
      %s160 = scalar_select %p157, %s158, %s159
      %p163 = pneg %p157
      %p164 = scmp.eq.s32.totalorder %s32, 1
      %p165 = por %p163, %p164
      %p166 = scmp.ne.s32.totalorder %s158, %s161
      %p167 = scmp.eq.s32.totalorder %s32, 0
      %p168 = por %p166, %p167
      %p169 = scmp.ne.s32.totalorder %s158, %s161
      %p170 = scmp.eq.s32.totalorder %s37, 1
      %p171 = por %p169, %p170
      %p172 = scmp.ne.s32.totalorder %s161, %s162
      %p173 = scmp.eq.s32.totalorder %s37, 0
      %p174 = por %p172, %p173
      %p175 = scmp.ne.s32.totalorder %s161, %s162
      %p176 = scmp.eq.s32.totalorder %s38, 1
      %p177 = por %p175, %p176
      %p179 = scmp.ne.s32.totalorder %s162, %s178
      %p180 = scmp.eq.s32.totalorder %s38, 0
      %p181 = por %p179, %p180
      %s182 = ssub.s32 %s40, %s47
      %p183 = scmp.eq.s32.totalorder %s182, 0
      %s185 = sadd.s32 %s184, 1
      %s186 = scalar_select %p183, %s184, %s185
      %p189 = pneg %p183
      %p190 = scmp.eq.s32.totalorder %s32, 1
      %p191 = por %p189, %p190
      %p192 = scmp.ne.s32.totalorder %s184, %s187
      %p193 = scmp.eq.s32.totalorder %s32, 0
      %p194 = por %p192, %p193
      %p195 = scmp.ne.s32.totalorder %s184, %s187
      %p196 = scmp.eq.s32.totalorder %s37, 1
      %p197 = por %p195, %p196
      %p198 = scmp.ne.s32.totalorder %s187, %s188
      %p199 = scmp.eq.s32.totalorder %s37, 0
      %p200 = por %p198, %p199
      %p201 = scmp.ne.s32.totalorder %s187, %s188
      %p202 = scmp.eq.s32.totalorder %s38, 1
      %p203 = por %p201, %p202
      %p205 = scmp.ne.s32.totalorder %s188, %s204
      %p206 = scmp.eq.s32.totalorder %s38, 0
      %p207 = por %p205, %p206
      %s208 = ssub.s32 %s40, %s47
      %p209 = scmp.eq.s32.totalorder %s208, 0
      %s211 = sadd.s32 %s210, 1
      %s212 = scalar_select %p209, %s210, %s211
      %p215 = pneg %p209
      %p216 = scmp.eq.s32.totalorder %s32, 1
      %p217 = por %p215, %p216
      %p218 = scmp.ne.s32.totalorder %s210, %s213
      %p219 = scmp.eq.s32.totalorder %s32, 0
      %p220 = por %p218, %p219
      %p221 = scmp.ne.s32.totalorder %s210, %s213
      %p222 = scmp.eq.s32.totalorder %s37, 1
      %p223 = por %p221, %p222
      %p224 = scmp.ne.s32.totalorder %s213, %s214
      %p225 = scmp.eq.s32.totalorder %s37, 0
      %p226 = por %p224, %p225
      %p227 = scmp.ne.s32.totalorder %s213, %s214
      %p228 = scmp.eq.s32.totalorder %s38, 1
      %p229 = por %p227, %p228
      %p231 = scmp.ne.s32.totalorder %s214, %s230
      %p232 = scmp.eq.s32.totalorder %s38, 0
      %p233 = por %p231, %p232
      %s234 = ssub.s32 %s40, %s47
      %p235 = scmp.eq.s32.totalorder %s234, 0
      %s237 = sadd.s32 %s236, 1
      %s238 = scalar_select %p235, %s236, %s237
      %p241 = pneg %p235
      %p242 = scmp.eq.s32.totalorder %s32, 1
      %p243 = por %p241, %p242
      %p244 = scmp.ne.s32.totalorder %s236, %s239
      %p245 = scmp.eq.s32.totalorder %s32, 0
      %p246 = por %p244, %p245
      %p247 = scmp.ne.s32.totalorder %s236, %s239
      %p248 = scmp.eq.s32.totalorder %s37, 1
      %p249 = por %p247, %p248
      %p250 = scmp.ne.s32.totalorder %s239, %s240
      %p251 = scmp.eq.s32.totalorder %s37, 0
      %p252 = por %p250, %p251
      %p253 = scmp.ne.s32.totalorder %s239, %s240
      %p254 = scmp.eq.s32.totalorder %s38, 1
      %p255 = por %p253, %p254
      %p257 = scmp.ne.s32.totalorder %s240, %s256
      %p258 = scmp.eq.s32.totalorder %s38, 0
      %p259 = por %p257, %p258
      %s260 = ssub.s32 %s40, %s47
      %p261 = scmp.eq.s32.totalorder %s260, 0
      %s263 = sadd.s32 %s262, 1
      %s264 = scalar_select %p261, %s262, %s263
      %p267 = pneg %p261
      %p268 = scmp.eq.s32.totalorder %s32, 1
      %p269 = por %p267, %p268
      %p270 = scmp.ne.s32.totalorder %s262, %s265
      %p271 = scmp.eq.s32.totalorder %s32, 0
      %p272 = por %p270, %p271
      %p273 = scmp.ne.s32.totalorder %s262, %s265
      %p274 = scmp.eq.s32.totalorder %s37, 1
      %p275 = por %p273, %p274
      %p276 = scmp.ne.s32.totalorder %s265, %s266
      %p277 = scmp.eq.s32.totalorder %s37, 0
      %p278 = por %p276, %p277
      %p279 = scmp.ne.s32.totalorder %s265, %s266
      %p280 = scmp.eq.s32.totalorder %s38, 1
      %p281 = por %p279, %p280
      %p283 = scmp.ne.s32.totalorder %s266, %s282
      %p284 = scmp.eq.s32.totalorder %s38, 0
      %p285 = por %p283, %p284
      %s286 = ssub.s32 %s40, %s47
      %p287 = scmp.eq.s32.totalorder %s286, 0
      %s289 = sadd.s32 %s288, 1
      %s290 = scalar_select %p287, %s288, %s289
      %p293 = pneg %p287
      %p294 = scmp.eq.s32.totalorder %s32, 1
      %p295 = por %p293, %p294
      %p296 = scmp.ne.s32.totalorder %s288, %s291
      %p297 = scmp.eq.s32.totalorder %s32, 0
      %p298 = por %p296, %p297
      %p299 = scmp.ne.s32.totalorder %s288, %s291
      %p300 = scmp.eq.s32.totalorder %s37, 1
      %p301 = por %p299, %p300
      %p302 = scmp.ne.s32.totalorder %s291, %s292
      %p303 = scmp.eq.s32.totalorder %s37, 0
      %p304 = por %p302, %p303
      %p305 = scmp.ne.s32.totalorder %s291, %s292
      %p306 = scmp.eq.s32.totalorder %s38, 1
      %p307 = por %p305, %p306
      %p309 = scmp.ne.s32.totalorder %s292, %s308
      %p310 = scmp.eq.s32.totalorder %s38, 0
      %p311 = por %p309, %p310
      %s312 = ssub.s32 %s40, %s47
      %p313 = scmp.eq.s32.totalorder %s312, 0
      %s315 = sadd.s32 %s314, 1
      %s316 = scalar_select %p313, %s314, %s315
      %p319 = pneg %p313
      %p320 = scmp.eq.s32.totalorder %s32, 1
      %p321 = por %p319, %p320
      %p322 = scmp.ne.s32.totalorder %s314, %s317
      %p323 = scmp.eq.s32.totalorder %s32, 0
      %p324 = por %p322, %p323
      %p325 = scmp.ne.s32.totalorder %s314, %s317
      %p326 = scmp.eq.s32.totalorder %s37, 1
      %p327 = por %p325, %p326
      %p328 = scmp.ne.s32.totalorder %s317, %s318
      %p329 = scmp.eq.s32.totalorder %s37, 0
      %p330 = por %p328, %p329
      %p331 = scmp.ne.s32.totalorder %s317, %s318
      %p332 = scmp.eq.s32.totalorder %s38, 1
      %p333 = por %p331, %p332
      %p335 = scmp.ne.s32.totalorder %s318, %s334
      %p336 = scmp.eq.s32.totalorder %s38, 0
      %p337 = por %p335, %p336
      %s338 = ssub.s32 %s40, %s47
      %p339 = scmp.eq.s32.totalorder %s338, 0
      %s341 = sadd.s32 %s340, 1
      %s342 = scalar_select %p339, %s340, %s341
      %p345 = pneg %p339
      %p346 = scmp.eq.s32.totalorder %s32, 1
      %p347 = por %p345, %p346
      %p348 = scmp.ne.s32.totalorder %s340, %s343
      %p349 = scmp.eq.s32.totalorder %s32, 0
      %p350 = por %p348, %p349
      %p351 = scmp.ne.s32.totalorder %s340, %s343
      %p352 = scmp.eq.s32.totalorder %s37, 1
      %p353 = por %p351, %p352
      %p354 = scmp.ne.s32.totalorder %s343, %s344
      %p355 = scmp.eq.s32.totalorder %s37, 0
      %p356 = por %p354, %p355
      %p357 = scmp.ne.s32.totalorder %s343, %s344
      %p358 = scmp.eq.s32.totalorder %s38, 1
      %p359 = por %p357, %p358
      %p361 = scmp.ne.s32.totalorder %s344, %s360
      %p362 = scmp.eq.s32.totalorder %s38, 0
      %p363 = por %p361, %p362
      %s364 = ssub.s32 %s40, %s47
      %p365 = scmp.eq.s32.totalorder %s364, 0
      %s367 = sadd.s32 %s366, 1
      %s368 = scalar_select %p365, %s366, %s367
      %p371 = pneg %p365
      %p372 = scmp.eq.s32.totalorder %s32, 1
      %p373 = por %p371, %p372
      %p374 = scmp.ne.s32.totalorder %s366, %s369
      %p375 = scmp.eq.s32.totalorder %s32, 0
      %p376 = por %p374, %p375
      %p377 = scmp.ne.s32.totalorder %s366, %s369
      %p378 = scmp.eq.s32.totalorder %s37, 1
      %p379 = por %p377, %p378
      %p380 = scmp.ne.s32.totalorder %s369, %s370
      %p381 = scmp.eq.s32.totalorder %s37, 0
      %p382 = por %p380, %p381
      %p383 = scmp.ne.s32.totalorder %s369, %s370
      %p384 = scmp.eq.s32.totalorder %s38, 1
      %p385 = por %p383, %p384
      %p387 = scmp.ne.s32.totalorder %s370, %s386
      %p388 = scmp.eq.s32.totalorder %s38, 0
      %p389 = por %p387, %p388
      %s390 = ssub.s32 %s40, %s47
      %p391 = scmp.eq.s32.totalorder %s390, 0
      %s393 = sadd.s32 %s392, 1
      %s394 = scalar_select %p391, %s392, %s393
      %p397 = pneg %p391
      %p398 = scmp.eq.s32.totalorder %s32, 1
      %p399 = por %p397, %p398
      %p400 = scmp.ne.s32.totalorder %s392, %s395
      %p401 = scmp.eq.s32.totalorder %s32, 0
      %p402 = por %p400, %p401
      %p403 = scmp.ne.s32.totalorder %s392, %s395
      %p404 = scmp.eq.s32.totalorder %s37, 1
      %p405 = por %p403, %p404
      %p406 = scmp.ne.s32.totalorder %s395, %s396
      %p407 = scmp.eq.s32.totalorder %s37, 0
      %p408 = por %p406, %p407
      %p409 = scmp.ne.s32.totalorder %s395, %s396
      %p410 = scmp.eq.s32.totalorder %s38, 1
      %p411 = por %p409, %p410
      %p413 = scmp.ne.s32.totalorder %s396, %s412
      %p414 = scmp.eq.s32.totalorder %s38, 0
      %p415 = por %p413, %p414
      %s417 = sadd.s32 %s416, 1
      %p420 = scmp.eq.s32.totalorder %s32, 1
      %p421 = scmp.ne.s32.totalorder %s416, %s418
      %p422 = scmp.eq.s32.totalorder %s32, 0
      %p423 = por %p421, %p422
      %p424 = scmp.ne.s32.totalorder %s416, %s418
      %p425 = scmp.eq.s32.totalorder %s37, 1
      %p426 = por %p424, %p425
      %p427 = scmp.ne.s32.totalorder %s418, %s419
      %p428 = scmp.eq.s32.totalorder %s37, 0
      %p429 = por %p427, %p428
      %p430 = scmp.ne.s32.totalorder %s418, %s419
      %p431 = scmp.eq.s32.totalorder %s38, 1
      %p432 = por %p430, %p431
      %p434 = scmp.ne.s32.totalorder %s419, %s433
      %p435 = scmp.eq.s32.totalorder %s38, 0
      %p436 = por %p434, %p435
      %s438 = sadd.s32 %s437, 1
      %p441 = scmp.eq.s32.totalorder %s32, 1
      %p442 = scmp.ne.s32.totalorder %s437, %s439
      %p443 = scmp.eq.s32.totalorder %s32, 0
      %p444 = por %p442, %p443
      %p445 = scmp.ne.s32.totalorder %s437, %s439
      %p446 = scmp.eq.s32.totalorder %s37, 1
      %p447 = por %p445, %p446
      %p448 = scmp.ne.s32.totalorder %s439, %s440
      %p449 = scmp.eq.s32.totalorder %s37, 0
      %p450 = por %p448, %p449
      %p451 = scmp.ne.s32.totalorder %s439, %s440
      %p452 = scmp.eq.s32.totalorder %s38, 1
      %p453 = por %p451, %p452
      %p455 = scmp.ne.s32.totalorder %s440, %s454
      %p456 = scmp.eq.s32.totalorder %s38, 0
      %p457 = por %p455, %p456
      %s459 = sadd.s32 %s458, 1
      %p462 = scmp.eq.s32.totalorder %s32, 1
      %p463 = scmp.ne.s32.totalorder %s458, %s460
      %p464 = scmp.eq.s32.totalorder %s32, 0
      %p465 = por %p463, %p464
      %p466 = scmp.ne.s32.totalorder %s458, %s460
      %p467 = scmp.eq.s32.totalorder %s37, 1
      %p468 = por %p466, %p467
      %p469 = scmp.ne.s32.totalorder %s460, %s461
      %p470 = scmp.eq.s32.totalorder %s37, 0
      %p471 = por %p469, %p470
      %p472 = scmp.ne.s32.totalorder %s460, %s461
      %p473 = scmp.eq.s32.totalorder %s38, 1
      %p474 = por %p472, %p473
      %p476 = scmp.ne.s32.totalorder %s461, %s475
      %p477 = scmp.eq.s32.totalorder %s38, 0
      %p478 = por %p476, %p477
      %s480 = sadd.s32 %s479, 1
      %p483 = scmp.eq.s32.totalorder %s32, 1
      %p484 = scmp.ne.s32.totalorder %s479, %s481
      %p485 = scmp.eq.s32.totalorder %s32, 0
      %p486 = por %p484, %p485
      %p487 = scmp.ne.s32.totalorder %s479, %s481
      %p488 = scmp.eq.s32.totalorder %s37, 1
      %p489 = por %p487, %p488
      %p490 = scmp.ne.s32.totalorder %s481, %s482
      %p491 = scmp.eq.s32.totalorder %s37, 0
      %p492 = por %p490, %p491
      %p493 = scmp.ne.s32.totalorder %s481, %s482
      %p494 = scmp.eq.s32.totalorder %s38, 1
      %p495 = por %p493, %p494
      %p497 = scmp.ne.s32.totalorder %s482, %s496
      %p498 = scmp.eq.s32.totalorder %s38, 0
      %p499 = por %p497, %p498
      %s500 = ssub.s32 %s39, %s51
      %p501 = scmp.eq.s32.totalorder %s500, 0
      %s503 = sadd.s32 %s502, 1
      %s504 = scalar_select %p501, %s502, %s503
      %p507 = pneg %p501
      %p508 = scmp.eq.s32.totalorder %s32, 1
      %p509 = por %p507, %p508
      %p510 = scmp.ne.s32.totalorder %s502, %s505
      %p511 = scmp.eq.s32.totalorder %s32, 0
      %p512 = por %p510, %p511
      %p513 = scmp.ne.s32.totalorder %s502, %s505
      %p514 = scmp.eq.s32.totalorder %s37, 1
      %p515 = por %p513, %p514
      %p516 = scmp.ne.s32.totalorder %s505, %s506
      %p517 = scmp.eq.s32.totalorder %s37, 0
      %p518 = por %p516, %p517
      %p519 = scmp.ne.s32.totalorder %s505, %s506
      %p520 = scmp.eq.s32.totalorder %s38, 1
      %p521 = por %p519, %p520
      %p523 = scmp.ne.s32.totalorder %s506, %s522
      %p524 = scmp.eq.s32.totalorder %s38, 0
      %p525 = por %p523, %p524
      %p526 = scmp.le.s32.totalorder 1, %s32
      %p527 = scmp.lt.s32.totalorder %s32, 3
      %p528 = pnand %p526, %p527
      %p529 = pneg %p528
      // Predicated region
      $region9: #{tpu_custom_call.1} parent=5 // pred_check
        _
      $region10: #{tpu_custom_call.1} parent=5 // pred_check_branch
        %531 = sbr.rel (%p528) target = $region12
      $region11: #{tpu_custom_call.1} parent=5 // pred_region
        %s532 = ssub.s32 %s32, 1
        // Predicated region
        $region13: #{tpu_custom_call.1} parent=11 // pred_check
          %p533 = pneg %p70
        $region14: #{tpu_custom_call.1} parent=11 // pred_check_branch
          %535 = sbr.rel (%p533) target = $region16
        $region15: #{tpu_custom_call.1} parent=11 // pred_region
          %s536 = smul.u32 2, %s41
          %p537 = scmp.lt.s32.totalorder %s536, 1
          %s538 = scalar_select %p537, %s536, 1
          %s539 = smul.addr %s538, 8
          %s540 = scalar_lea.vmem %s0, %s539
          %s541 = smul.u32 2, %s41
        $region16: #{tpu_custom_call.1} parent=11 // pred_fallthru
          _
        // Predicated region
        $region17: #{tpu_custom_call.1} parent=11 // pred_check
          %p542 = pneg %p96
        $region18: #{tpu_custom_call.1} parent=11 // pred_check_branch
          %544 = sbr.rel (%p542) target = $region20
        $region19: #{tpu_custom_call.1} parent=11 // pred_region
          %s545 = smul.u32 2, %s41
          %p546 = scmp.lt.s32.totalorder %s545, 1
          %s547 = scalar_select %p546, %s545, 1
          %s548 = scalar_lea.vmem %s1, %s547
          %s549 = smul.u32 2, %s41
        $region20: #{tpu_custom_call.1} parent=11 // pred_fallthru
          _
        // Predicated region
        $region21: #{tpu_custom_call.1} parent=11 // pred_check
          %p550 = pneg %p429
        $region22: #{tpu_custom_call.1} parent=11 // pred_check_branch
          %552 = sbr.rel (%p550) target = $region24
        $region23: #{tpu_custom_call.1} parent=11 // pred_region
          _
        $region24: #{tpu_custom_call.1} parent=11 // pred_fallthru
          _
        // Predicated region
        $region25: #{tpu_custom_call.1} parent=11 // pred_check
          %p553 = pneg %p450
        $region26: #{tpu_custom_call.1} parent=11 // pred_check_branch
          %555 = sbr.rel (%p553) target = $region28
        $region27: #{tpu_custom_call.1} parent=11 // pred_region
          %s557 = ssub.s32 16, 16
          %558 = vsyncadd [#allocation10], %s557
          %s560 = sshll.u32 [#allocation9], 4
          %s561 = int_to_ptr.vmem [resolvable:$true] %s560
          %563 = dma.hbm_to_vmem [thread:$0]  %s15, 16, %s561, [#allocation10]
        $region28: #{tpu_custom_call.1} parent=11 // pred_fallthru
          _
        // Predicated region
        $region29: #{tpu_custom_call.1} parent=11 // pred_check
          %p564 = pneg %p471
        $region30: #{tpu_custom_call.1} parent=11 // pred_check_branch
          %566 = sbr.rel (%p564) target = $region32
        $region31: #{tpu_custom_call.1} parent=11 // pred_region
          _
        $region32: #{tpu_custom_call.1} parent=11 // pred_fallthru
          _
        // Predicated region
        $region33: #{tpu_custom_call.1} parent=11 // pred_check
          %p567 = pneg %p492
        $region34: #{tpu_custom_call.1} parent=11 // pred_check_branch
          %569 = sbr.rel (%p567) target = $region36
        $region35: #{tpu_custom_call.1} parent=11 // pred_region
          _
        $region36: #{tpu_custom_call.1} parent=11 // pred_fallthru
          _
      $region12: #{tpu_custom_call.1} parent=5 // pred_fallthru
        _
      %p570 = scmp.lt.s32.totalorder %s32, 2
      // Predicated region
      $region37: #{tpu_custom_call.1} parent=5 // pred_check
        %p571 = pneg %p570
      $region38: #{tpu_custom_call.1} parent=5 // pred_check_branch
        %573 = sbr.rel (%p571) target = $region40
      $region39: #{tpu_custom_call.1} parent=5 // pred_region
        // Predicated region
        $region41: #{tpu_custom_call.1} parent=39 // pred_check
          %p574 = pneg %p116
        $region42: #{tpu_custom_call.1} parent=39 // pred_check_branch
          %576 = sbr.rel (%p574) target = $region44
        $region43: #{tpu_custom_call.1} parent=39 // pred_region
          %p577 = scmp.lt.s32.totalorder %s40, 1
          %s578 = scalar_select %p577, %s40, 1
          %s579 = smul.addr %s578, 4
          %s580 = smul.addr %s579, 8
          %s581 = scalar_lea.vmem %s2, %s580
        $region44: #{tpu_custom_call.1} parent=39 // pred_fallthru
          _
        // Predicated region
        $region45: #{tpu_custom_call.1} parent=39 // pred_check
          %p582 = pneg %p142
        $region46: #{tpu_custom_call.1} parent=39 // pred_check_branch
          %584 = sbr.rel (%p582) target = $region48
        $region47: #{tpu_custom_call.1} parent=39 // pred_region
          %p585 = scmp.lt.s32.totalorder %s40, 1
          %s586 = scalar_select %p585, %s40, 1
          %s587 = scalar_lea.vmem %s3, %s586
        $region48: #{tpu_custom_call.1} parent=39 // pred_fallthru
          _
        // Predicated region
        $region49: #{tpu_custom_call.1} parent=39 // pred_check
          %p588 = pneg %p168
        $region50: #{tpu_custom_call.1} parent=39 // pred_check_branch
          %590 = sbr.rel (%p588) target = $region52
        $region51: #{tpu_custom_call.1} parent=39 // pred_region
          %p591 = scmp.lt.s32.totalorder %s40, 1
          %s592 = scalar_select %p591, %s40, 1
          %s593 = smul.addr %s592, 4
          %s594 = smul.addr %s593, 8
          %s595 = scalar_lea.vmem %s4, %s594
        $region52: #{tpu_custom_call.1} parent=39 // pred_fallthru
          _
        // Predicated region
        $region53: #{tpu_custom_call.1} parent=39 // pred_check
          %p596 = pneg %p194
        $region54: #{tpu_custom_call.1} parent=39 // pred_check_branch
          %598 = sbr.rel (%p596) target = $region56
        $region55: #{tpu_custom_call.1} parent=39 // pred_region
          %p599 = scmp.lt.s32.totalorder %s40, 1
          %s600 = scalar_select %p599, %s40, 1
          %s601 = scalar_lea.vmem %s5, %s600
        $region56: #{tpu_custom_call.1} parent=39 // pred_fallthru
          _
        // Predicated region
        $region57: #{tpu_custom_call.1} parent=39 // pred_check
          %p602 = pneg %p220
        $region58: #{tpu_custom_call.1} parent=39 // pred_check_branch
          %604 = sbr.rel (%p602) target = $region60
        $region59: #{tpu_custom_call.1} parent=39 // pred_region
          %p605 = scmp.lt.s32.totalorder %s40, 1
          %s606 = scalar_select %p605, %s40, 1
          %s607 = scalar_lea.vmem %s6, %s606
        $region60: #{tpu_custom_call.1} parent=39 // pred_fallthru
          _
        // Predicated region
        $region61: #{tpu_custom_call.1} parent=39 // pred_check
          %p608 = pneg %p246
        $region62: #{tpu_custom_call.1} parent=39 // pred_check_branch
          %610 = sbr.rel (%p608) target = $region64
        $region63: #{tpu_custom_call.1} parent=39 // pred_region
          %p611 = scmp.lt.s32.totalorder %s40, 1
          %s612 = scalar_select %p611, %s40, 1
          %s613 = scalar_lea.vmem %s7, %s612
        $region64: #{tpu_custom_call.1} parent=39 // pred_fallthru
          _
        // Predicated region
        $region65: #{tpu_custom_call.1} parent=39 // pred_check
          %p614 = pneg %p272
        $region66: #{tpu_custom_call.1} parent=39 // pred_check_branch
          %616 = sbr.rel (%p614) target = $region68
        $region67: #{tpu_custom_call.1} parent=39 // pred_region
          %p617 = scmp.lt.s32.totalorder %s40, 1
          %s618 = scalar_select %p617, %s40, 1
          %s619 = smul.addr %s618, 4
          %s620 = smul.addr %s619, 8
          %s621 = scalar_lea.vmem %s8, %s620
        $region68: #{tpu_custom_call.1} parent=39 // pred_fallthru
          _
        // Predicated region
        $region69: #{tpu_custom_call.1} parent=39 // pred_check
          %p622 = pneg %p298
        $region70: #{tpu_custom_call.1} parent=39 // pred_check_branch
          %624 = sbr.rel (%p622) target = $region72
        $region71: #{tpu_custom_call.1} parent=39 // pred_region
          %p625 = scmp.lt.s32.totalorder %s40, 1
          %s626 = scalar_select %p625, %s40, 1
          %s627 = scalar_lea.vmem %s9, %s626
        $region72: #{tpu_custom_call.1} parent=39 // pred_fallthru
          _
        // Predicated region
        $region73: #{tpu_custom_call.1} parent=39 // pred_check
          %p628 = pneg %p324
        $region74: #{tpu_custom_call.1} parent=39 // pred_check_branch
          %630 = sbr.rel (%p628) target = $region76
        $region75: #{tpu_custom_call.1} parent=39 // pred_region
          %p631 = scmp.lt.s32.totalorder %s40, 1
          %s632 = scalar_select %p631, %s40, 1
          %s633 = smul.addr %s632, 8
          %s634 = smul.addr %s633, 8
          %s635 = scalar_lea.vmem %s10, %s634
        $region76: #{tpu_custom_call.1} parent=39 // pred_fallthru
          _
        // Predicated region
        $region77: #{tpu_custom_call.1} parent=39 // pred_check
          %p636 = pneg %p350
        $region78: #{tpu_custom_call.1} parent=39 // pred_check_branch
          %638 = sbr.rel (%p636) target = $region80
        $region79: #{tpu_custom_call.1} parent=39 // pred_region
          %s639 = sand.u32 %s340, 1
          %s640 = scalar_lea.sflag [#allocation4], %s639
          %s641 = sand.u32 %s340, 1
          %s642 = scalar_lea.vmem [#allocation3], %s641
          %s644 = ssub.s32 16, 16
          %645 = vsyncadd %s640, %s644
          %s646 = smul.addr %s40, 16
          %s647 = scalar_lea.hbm %s11, %s646
          %s649 = sshll.u32 %s642, 4
          %s650 = int_to_ptr.vmem [resolvable:$true] %s649
          %652 = dma.hbm_to_vmem [thread:$0]  %s647, 16, %s650, %s640
        $region80: #{tpu_custom_call.1} parent=39 // pred_fallthru
          _
        // Predicated region
        $region81: #{tpu_custom_call.1} parent=39 // pred_check
          %p653 = pneg %p376
        $region82: #{tpu_custom_call.1} parent=39 // pred_check_branch
          %655 = sbr.rel (%p653) target = $region84
        $region83: #{tpu_custom_call.1} parent=39 // pred_region
          %s656 = sand.u32 %s32, 1
          %s657 = scalar_lea.sflag [#allocation7], %s656
          %s658 = sand.u32 %s366, 1
          %s659 = scalar_lea.vmem [#allocation6], %s658
          %s661 = ssub.s32 16, 16
          %662 = vsyncadd %s657, %s661
          %s663 = smul.addr %s40, 16
          %s664 = scalar_lea.hbm %s12, %s663
          %s666 = sshll.u32 %s659, 4
          %s667 = int_to_ptr.vmem [resolvable:$true] %s666
          %669 = dma.hbm_to_vmem [thread:$0]  %s664, 16, %s667, %s657
        $region84: #{tpu_custom_call.1} parent=39 // pred_fallthru
          _
        // Predicated region
        $region85: #{tpu_custom_call.1} parent=39 // pred_check
          %p670 = pneg %p402
        $region86: #{tpu_custom_call.1} parent=39 // pred_check_branch
          %672 = sbr.rel (%p670) target = $region88
        $region87: #{tpu_custom_call.1} parent=39 // pred_region
          %s673 = sand.u32 %s32, 1
          %s674 = scalar_lea.sflag [#allocation7], %s673
          %s675 = sand.u32 %s392, 1
          %s676 = scalar_lea.vmem [#allocation8], %s675
          %s678 = ssub.s32 16, 16
          %679 = vsyncadd %s674, %s678
          %s680 = smul.addr %s40, 16
          %s681 = scalar_lea.hbm %s13, %s680
          %s683 = sshll.u32 %s676, 4
          %s684 = int_to_ptr.vmem [resolvable:$true] %s683
          %686 = dma.hbm_to_vmem [thread:$0]  %s681, 16, %s684, %s674
        $region88: #{tpu_custom_call.1} parent=39 // pred_fallthru
          _
      $region40: #{tpu_custom_call.1} parent=5 // pred_fallthru
        _
      %p687 = scmp.le.s32.totalorder 1, %s32
      %p688 = scmp.lt.s32.totalorder %s32, 3
      %p689 = pnand %p687, %p688
      %p690 = pneg %p689
      // Predicated region
      $region89: #{tpu_custom_call.1} parent=5 // pred_check
        _
      $region90: #{tpu_custom_call.1} parent=5 // pred_check_branch
        %692 = sbr.rel (%p689) target = $region92
      $region91: #{tpu_custom_call.1} parent=5 // pred_region
        %s693 = ssub.s32 %s32, 1
        %s694 = sand.u32 %s343, 1
        %s695 = scalar_lea.sflag [#allocation4], %s694
        %s696 = sand.u32 %s343, 1
        %s697 = scalar_lea.vmem [#allocation3], %s696
        // Predicated region
        $region93: #{tpu_custom_call.1} parent=91 // pred_check
          %p698 = pneg %p356
        $region94: #{tpu_custom_call.1} parent=91 // pred_check_branch
          %700 = sbr.rel (%p698) target = $region96
        $region95: #{tpu_custom_call.1} parent=91 // pred_region
          %701 = dma.done %s695, 16
        $region96: #{tpu_custom_call.1} parent=91 // pred_fallthru
          _
        %s702 = sand.u32 %s37, 1
        %s703 = scalar_lea.sflag [#allocation7], %s702
        %s704 = sand.u32 %s369, 1
        %s705 = scalar_lea.vmem [#allocation6], %s704
        // Predicated region
        $region97: #{tpu_custom_call.1} parent=91 // pred_check
          %p706 = pneg %p382
        $region98: #{tpu_custom_call.1} parent=91 // pred_check_branch
          %708 = sbr.rel (%p706) target = $region100
        $region99: #{tpu_custom_call.1} parent=91 // pred_region
          %709 = dma.done %s703, 16
        $region100: #{tpu_custom_call.1} parent=91 // pred_fallthru
          _
        %s710 = sand.u32 %s37, 1
        %s711 = scalar_lea.sflag [#allocation7], %s710
        %s712 = sand.u32 %s395, 1
        %s713 = scalar_lea.vmem [#allocation8], %s712
        // Predicated region
        $region101: #{tpu_custom_call.1} parent=91 // pred_check
          %p714 = pneg %p408
        $region102: #{tpu_custom_call.1} parent=91 // pred_check_branch
          %716 = sbr.rel (%p714) target = $region104
        $region103: #{tpu_custom_call.1} parent=91 // pred_region
          %717 = dma.done %s711, 16
        $region104: #{tpu_custom_call.1} parent=91 // pred_fallthru
          _
        // Predicated region
        $region105: #{tpu_custom_call.1} parent=91 // pred_check
          %p718 = pneg %p450
        $region106: #{tpu_custom_call.1} parent=91 // pred_check_branch
          %720 = sbr.rel (%p718) target = $region108
        $region107: #{tpu_custom_call.1} parent=91 // pred_region
          %721 = dma.done [#allocation10], 16
        $region108: #{tpu_custom_call.1} parent=91 // pred_fallthru
          _
        %s722 = smul.u32 2, %s41
        %p723 = scmp.lt.s32.totalorder %s722, 1
        %s724 = scalar_select %p723, %s722, 1
        %s725 = smul.addr %s724, 8
        %s726 = scalar_lea.vmem %s0, %s725
        %p727 = pneg %p70
        %p728 = pneg %p67
        %s729 = smul.u32 2, %s41
        %p730 = scmp.lt.s32.totalorder %s729, 1
        %s731 = scalar_select %p730, %s729, 1
        %s732 = scalar_lea.vmem %s1, %s731
        %p733 = pneg %p96
        %p734 = pneg %p93
        %p735 = scmp.lt.s32.totalorder %s42, 1
        %s736 = scalar_select %p735, %s42, 1
        %s737 = smul.addr %s736, 4
        %s738 = smul.addr %s737, 8
        %s739 = scalar_lea.vmem %s2, %s738
        %p740 = pneg %p122
        %p741 = pneg %p119
        %p742 = scmp.lt.s32.totalorder %s42, 1
        %s743 = scalar_select %p742, %s42, 1
        %s744 = scalar_lea.vmem %s3, %s743
        %p745 = pneg %p148
        %p746 = pneg %p145
        %p747 = scmp.lt.s32.totalorder %s42, 1
        %s748 = scalar_select %p747, %s42, 1
        %s749 = smul.addr %s748, 4
        %s750 = smul.addr %s749, 8
        %s751 = scalar_lea.vmem %s4, %s750
        %p752 = pneg %p174
        %p753 = pneg %p171
        %p754 = scmp.lt.s32.totalorder %s42, 1
        %s755 = scalar_select %p754, %s42, 1
        %s756 = scalar_lea.vmem %s5, %s755
        %p757 = pneg %p200
        %p758 = pneg %p197
        %p759 = scmp.lt.s32.totalorder %s42, 1
        %s760 = scalar_select %p759, %s42, 1
        %s761 = scalar_lea.vmem %s6, %s760
        %p762 = pneg %p226
        %p763 = pneg %p223
        %p764 = scmp.lt.s32.totalorder %s42, 1
        %s765 = scalar_select %p764, %s42, 1
        %s766 = scalar_lea.vmem %s7, %s765
        %p767 = pneg %p252
        %p768 = pneg %p249
        %p769 = scmp.lt.s32.totalorder %s42, 1
        %s770 = scalar_select %p769, %s42, 1
        %s771 = smul.addr %s770, 4
        %s772 = smul.addr %s771, 8
        %s773 = scalar_lea.vmem %s8, %s772
        %p774 = pneg %p278
        %p775 = pneg %p275
        %p776 = scmp.lt.s32.totalorder %s42, 1
        %s777 = scalar_select %p776, %s42, 1
        %s778 = scalar_lea.vmem %s9, %s777
        %p779 = pneg %p304
        %p780 = pneg %p301
        %p781 = scmp.lt.s32.totalorder %s42, 1
        %s782 = scalar_select %p781, %s42, 1
        %s783 = smul.addr %s782, 8
        %s784 = smul.addr %s783, 8
        %s785 = scalar_lea.vmem %s10, %s784
        %p786 = pneg %p330
        %p787 = pneg %p327
        %s788 = sand.u32 %s343, 1
        %s789 = scalar_lea.sflag [#allocation4], %s788
        %s790 = sand.u32 %s343, 1
        %s791 = scalar_lea.vmem [#allocation3], %s790
        %p792 = pneg %p356
        %p793 = pneg %p353
        %s794 = sand.u32 %s37, 1
        %s795 = scalar_lea.sflag [#allocation7], %s794
        %s796 = sand.u32 %s369, 1
        %s797 = scalar_lea.vmem [#allocation6], %s796
        %p798 = pneg %p382
        %p799 = pneg %p379
        %s800 = sand.u32 %s37, 1
        %s801 = scalar_lea.sflag [#allocation7], %s800
        %s802 = sand.u32 %s395, 1
        %s803 = scalar_lea.vmem [#allocation8], %s802
        %p804 = pneg %p408
        %p805 = pneg %p405
        %p806 = pneg %p429
        %p807 = pneg %p426
        %p808 = pneg %p450
        %p809 = pneg %p447
        %p810 = pneg %p471
        %p811 = pneg %p468
        %p812 = pneg %p492
        %p813 = pneg %p489
        %p814 = pneg %p518
        %p815 = pneg %p515
        %s816 = smul.u32 2, %s41
        %p817 = scmp.lt.s32.totalorder %s816, 1
        %s818 = scalar_select %p817, %s816, 1
        %s819 = smul.addr %s818, 8
        %s820 = scalar_lea.vmem %s0, %s819
        %s821 = smul.u32 2, %s41
        %s822 = smul.u32 2, %s41
        %p823 = scmp.lt.s32.totalorder %s822, 1
        %s824 = scalar_select %p823, %s822, 1
        %s825 = scalar_lea.vmem %s1, %s824
        %s826 = smul.u32 2, %s41
        %p827 = scmp.lt.s32.totalorder %s42, 1
        %s828 = scalar_select %p827, %s42, 1
        %s829 = smul.addr %s828, 4
        %s830 = smul.addr %s829, 8
        %s831 = scalar_lea.vmem %s2, %s830
        %p832 = scmp.lt.s32.totalorder %s42, 1
        %s833 = scalar_select %p832, %s42, 1
        %s834 = scalar_lea.vmem %s3, %s833
        %p835 = scmp.lt.s32.totalorder %s42, 1
        %s836 = scalar_select %p835, %s42, 1
        %s837 = smul.addr %s836, 4
        %s838 = smul.addr %s837, 8
        %s839 = scalar_lea.vmem %s4, %s838
        %p840 = scmp.lt.s32.totalorder %s42, 1
        %s841 = scalar_select %p840, %s42, 1
        %s842 = scalar_lea.vmem %s5, %s841
        %p843 = scmp.lt.s32.totalorder %s42, 1
        %s844 = scalar_select %p843, %s42, 1
        %s845 = scalar_lea.vmem %s6, %s844
        %p846 = scmp.lt.s32.totalorder %s42, 1
        %s847 = scalar_select %p846, %s42, 1
        %s848 = scalar_lea.vmem %s7, %s847
        %p849 = scmp.lt.s32.totalorder %s42, 1
        %s850 = scalar_select %p849, %s42, 1
        %s851 = smul.addr %s850, 4
        %s852 = smul.addr %s851, 8
        %s853 = scalar_lea.vmem %s8, %s852
        %p854 = scmp.lt.s32.totalorder %s42, 1
        %s855 = scalar_select %p854, %s42, 1
        %s856 = scalar_lea.vmem %s9, %s855
        %p857 = scmp.lt.s32.totalorder %s42, 1
        %s858 = scalar_select %p857, %s42, 1
        %s859 = smul.addr %s858, 8
        %s860 = smul.addr %s859, 8
        %s861 = scalar_lea.vmem %s10, %s860
        %s862 = smul.u32 2, %s41
        %p863 = scmp.eq.s32.totalorder %s42, 0
        // Predicated region
        $region109: #{tpu_custom_call.1} parent=91 // pred_check
          %p864 = pneg %p863
        $region110: #{tpu_custom_call.1} parent=91 // pred_check_branch
          %866 = sbr.rel (%p864) target = $region112
        $region111: #{tpu_custom_call.1} parent=91 // pred_region
          %v867 = vld [vmem:[%s820] sm:$0xff]
          %v868 = vld [vmem:[%s820 + $0x8] sm:$0xff]
          %vm869 = vcmask 261120
          %870 = vst.msk [vmem:[#allocation2] sm:$0xff] %vm869, %v867
          %871 = vst.msk [vmem:[#allocation2 + $0x8] sm:$0xff] %vm869, %v868
        $region112: #{tpu_custom_call.1} parent=91 // pred_fallthru
          _
        %v872 = vld [vmem:[#allocation2] sm:$0xff]
        %v873 = vld [vmem:[#allocation2 + $0x8] sm:$0xff]
        %v874 = vld [vmem:[%s825] sm:$0x1]
        %v875 = vld [vmem:[%s825 + $0x1] sm:$0x1]
        %v876 = vld [vmem:[%s831] sm:$0xff]
        %v877 = vld [vmem:[%s831 + $0x8] sm:$0xff]
        %v878 = vld [vmem:[%s831 + $0x10] sm:$0xff]
        %v879 = vld [vmem:[%s831 + $0x18] sm:$0xff]
        %v880 = vld [vmem:[%s834] sm:$0x1]
        %v882 = vlaneseq
        %v883 = vshrl.u32 %v882, 7
        %v884 = vsub.s32 0, %v883
        %v885 = vrot.slane %v880, %v884
        %vm887 = vcmask 261120
        %v889 = vsel %vm887, %v872, 0
        %v892 = vsel %vm887, %v873, 0
        %894 = vmatprep.subr.mxu0 0.0
        %895 = vmatpush1.msra.mxu0 %v876
        %896 = vmatprep.subr.mxu0 0.0
        %897 = vmatpush1.msra.mxu0 %v877
        %898 = vmatprep.subr.mxu0 0.0
        %899 = vmatpush1.msra.mxu0 %v878
        %900 = vmatprep.subr.mxu0 0.0
        %901 = vmatpush1.msra.mxu0 %v879
        %902 = vmatprep.subr.mxu0 0.0
        %903 = vmatpush1.msra.mxu0 0.0
        %904 = vmatprep.subr.mxu0 0.0
        %905 = vmatpush1.msra.mxu0 0.0
        %906 = vmatprep.subr.mxu0 0.0
        %907 = vmatpush1.msra.mxu0 0.0
        %908 = vmatprep.subr.mxu0 0.0
        %909 = vmatpush1.msra.mxu0 0.0
        %910 = vmatprep.subr.mxu0 0.0
        %911 = vmatpush1.msra.mxu0 0.0
        %912 = vmatprep.subr.mxu0 0.0
        %913 = vmatpush1.msra.mxu0 0.0
        %914 = vmatprep.subr.mxu0 0.0
        %915 = vmatpush1.msra.mxu0 0.0
        %916 = vmatprep.subr.mxu0 0.0
        %917 = vmatpush1.msra.mxu0 0.0
        %918 = vmatprep.subr.mxu0 0.0
        %919 = vmatpush1.msra.mxu0 0.0
        %920 = vmatprep.subr.mxu0 0.0
        %921 = vmatpush1.msra.mxu0 0.0
        %922 = vmatprep.subr.mxu0 0.0
        %923 = vmatpush1.msra.mxu0 0.0
        %924 = vmatprep.subr.mxu0 0.0
        %925 = vmatpush1.msra.mxu0 0.0
        %926 = vmatprep.subr.mxu0 0.0
        %927 = vmatpush1.msra.mxu0 0.0
        %928 = vmatprep.subr.mxu0 0.0
        %929 = vmatpush1.msra.mxu0 0.0
        %930 = vmatprep.subr.mxu0 0.0
        %931 = vmatpush1.msra.mxu0 0.0
        %932 = vmatprep.subr.mxu0 0.0
        %933 = vmatpush1.msra.mxu0 0.0
        %934 = vmatprep.subr.mxu0 0.0
        %935 = vmatpush1.msra.mxu0 0.0
        %936 = vmatprep.subr.mxu0 0.0
        %937 = vmatpush1.msra.mxu0 0.0
        %938 = vmatprep.subr.mxu0 0.0
        %939 = vmatpush1.msra.mxu0 0.0
        %940 = vmatprep.subr.mxu0 0.0
        %941 = vmatpush1.msra.mxu0 0.0
        %942 = vmatprep.subr.mxu0 0.0
        %943 = vmatpush1.msra.mxu0 0.0
        %944 = vmatprep.subr.mxu0 0.0
        %945 = vmatpush1.msra.mxu0 0.0
        %946 = vmatprep.subr.mxu0 0.0
        %947 = vmatpush1.msra.mxu0 0.0
        %948 = vmatprep.subr.mxu0 0.0
        %949 = vmatpush1.msra.mxu0 0.0
        %950 = vmatprep.subr.mxu0 0.0
        %951 = vmatpush1.msra.mxu0 0.0
        %952 = vmatprep.subr.mxu0 0.0
        %953 = vmatpush1.msra.mxu0 0.0
        %954 = vmatprep.subr.mxu0 0.0
        %955 = vmatpush1.msra.mxu0 0.0
        %956 = vmatprep.subr.mxu0 0.0
        %957 = vmatpush1.msra.mxu0 0.0
        %958 = vmatprep.mubr.f32.mxu0 0.0
        %959 = vmatmul.mubr.f32.gmra.mrb[0].mxu0 %v889
        %v960 = vpop.f32.mrb[0].mxu0
        %v961 = vadd.f32 %v885, %v960
        %v962 = vpop.f32.mrb[0].mxu0
        %963 = vmatprep.mubr.f32.mxu0 0.0
        %964 = vmatmul.mubr.f32.gmra.mrb[0].mxu0 %v892
        %v965 = vpop.f32.mrb[0].mxu0
        %v966 = vadd.f32 %v885, %v965
        %v967 = vpop.f32.mrb[0].mxu0
        %968 = vdwg.mxu0
        %v969 = vmul.f32 %v961, 0.25
        %v970 = vmul.f32 %v966, 0.25
        %972 = vrot.lane.b32.xlu0 %v961, 96
        %v973 = vpop.permute.xlu0 %972
        %vm974 = vcmask 130048
        %v976 = vsel %vm974, %v969, 0
        %v978 = vsel %vm974, %v973, 0
        %980 = vmatprep.subr.mxu0 0.0
        %981 = vmatpush1.xpose.msra.mxu0 %v978
        %982 = vmatprep.subr.mxu0 0.0
        %983 = vmatpush1.xpose.msra.mxu0 0.0
        %984 = vmatprep.subr.mxu0 0.0
        %985 = vmatpush1.xpose.msra.mxu0 0.0
        %986 = vmatprep.subr.mxu0 0.0
        %987 = vmatpush1.xpose.msra.mxu0 0.0
        %988 = vmatprep.subr.mxu0 0.0
        %989 = vmatpush1.xpose.msra.mxu0 0.0
        %990 = vmatprep.subr.mxu0 0.0
        %991 = vmatpush1.xpose.msra.mxu0 0.0
        %992 = vmatprep.subr.mxu0 0.0
        %993 = vmatpush1.xpose.msra.mxu0 0.0
        %994 = vmatprep.subr.mxu0 0.0
        %995 = vmatpush1.xpose.msra.mxu0 0.0
        %996 = vmatprep.subr.mxu0 0.0
        %997 = vmatpush1.xpose.msra.mxu0 0.0
        %998 = vmatprep.subr.mxu0 0.0
        %999 = vmatpush1.xpose.msra.mxu0 0.0
        %1000 = vmatprep.subr.mxu0 0.0
        %1001 = vmatpush1.xpose.msra.mxu0 0.0
        %1002 = vmatprep.subr.mxu0 0.0
        %1003 = vmatpush1.xpose.msra.mxu0 0.0
        %1004 = vmatprep.subr.mxu0 0.0
        %1005 = vmatpush1.xpose.msra.mxu0 0.0
        %1006 = vmatprep.subr.mxu0 0.0
        %1007 = vmatpush1.xpose.msra.mxu0 0.0
        %1008 = vmatprep.subr.mxu0 0.0
        %1009 = vmatpush1.xpose.msra.mxu0 0.0
        %1010 = vmatprep.subr.mxu0 0.0
        %1011 = vmatpush1.xpose.msra.mxu0 0.0
        %1012 = vmatprep.subr.mxu0 0.0
        %1013 = vmatpush1.xpose.msra.mxu0 0.0
        %1014 = vmatprep.subr.mxu0 0.0
        %1015 = vmatpush1.xpose.msra.mxu0 0.0
        %1016 = vmatprep.subr.mxu0 0.0
        %1017 = vmatpush1.xpose.msra.mxu0 0.0
        %1018 = vmatprep.subr.mxu0 0.0
        %1019 = vmatpush1.xpose.msra.mxu0 0.0
        %1020 = vmatprep.subr.mxu0 0.0
        %1021 = vmatpush1.xpose.msra.mxu0 0.0
        %1022 = vmatprep.subr.mxu0 0.0
        %1023 = vmatpush1.xpose.msra.mxu0 0.0
        %1024 = vmatprep.subr.mxu0 0.0
        %1025 = vmatpush1.xpose.msra.mxu0 0.0
        %1026 = vmatprep.subr.mxu0 0.0
        %1027 = vmatpush1.xpose.msra.mxu0 0.0
        %1028 = vmatprep.subr.mxu0 0.0
        %1029 = vmatpush1.xpose.msra.mxu0 0.0
        %1030 = vmatprep.subr.mxu0 0.0
        %1031 = vmatpush1.xpose.msra.mxu0 0.0
        %1032 = vmatprep.subr.mxu0 0.0
        %1033 = vmatpush1.xpose.msra.mxu0 0.0
        %1034 = vmatprep.subr.mxu0 0.0
        %1035 = vmatpush1.xpose.msra.mxu0 0.0
        %1036 = vmatprep.subr.mxu0 0.0
        %1037 = vmatpush1.xpose.msra.mxu0 0.0
        %1038 = vmatprep.subr.mxu0 0.0
        %1039 = vmatpush1.xpose.msra.mxu0 0.0
        %1040 = vmatprep.subr.mxu0 0.0
        %1041 = vmatpush1.xpose.msra.mxu0 0.0
        %1042 = vmatprep.subr.mxu0 0.0
        %1043 = vmatpush1.xpose.msra.mxu0 0.0
        %1044 = vmatprep.mubr.f32.mxu0 0.0
        %1045 = vmatmul.mubr.f32.gmra.mrb[0].mxu0 %v976
        %v1046 = vpop.f32.mrb[0].mxu0
        %v1047 = vadd.f32 0.0, %v1046
        %v1048 = vpop.f32.mrb[0].mxu0
        %1049 = vdwg.mxu0
        %1051 = vrot.lane.b32.xlu0 %v966, 96
        %v1052 = vpop.permute.xlu0 %1051
        %v1054 = vsel %vm974, %v970, 0
        %v1056 = vsel %vm974, %v1052, 0
        %1058 = vmatprep.subr.mxu0 0.0
        %1059 = vmatpush1.xpose.msra.mxu0 %v1056
        %1060 = vmatprep.subr.mxu0 0.0
        %1061 = vmatpush1.xpose.msra.mxu0 0.0
        %1062 = vmatprep.subr.mxu0 0.0
        %1063 = vmatpush1.xpose.msra.mxu0 0.0
        %1064 = vmatprep.subr.mxu0 0.0
        %1065 = vmatpush1.xpose.msra.mxu0 0.0
        %1066 = vmatprep.subr.mxu0 0.0
        %1067 = vmatpush1.xpose.msra.mxu0 0.0
        %1068 = vmatprep.subr.mxu0 0.0
        %1069 = vmatpush1.xpose.msra.mxu0 0.0
        %1070 = vmatprep.subr.mxu0 0.0
        %1071 = vmatpush1.xpose.msra.mxu0 0.0
        %1072 = vmatprep.subr.mxu0 0.0
        %1073 = vmatpush1.xpose.msra.mxu0 0.0
        %1074 = vmatprep.subr.mxu0 0.0
        %1075 = vmatpush1.xpose.msra.mxu0 0.0
        %1076 = vmatprep.subr.mxu0 0.0
        %1077 = vmatpush1.xpose.msra.mxu0 0.0
        %1078 = vmatprep.subr.mxu0 0.0
        %1079 = vmatpush1.xpose.msra.mxu0 0.0
        %1080 = vmatprep.subr.mxu0 0.0
        %1081 = vmatpush1.xpose.msra.mxu0 0.0
        %1082 = vmatprep.subr.mxu0 0.0
        %1083 = vmatpush1.xpose.msra.mxu0 0.0
        %1084 = vmatprep.subr.mxu0 0.0
        %1085 = vmatpush1.xpose.msra.mxu0 0.0
        %1086 = vmatprep.subr.mxu0 0.0
        %1087 = vmatpush1.xpose.msra.mxu0 0.0
        %1088 = vmatprep.subr.mxu0 0.0
        %1089 = vmatpush1.xpose.msra.mxu0 0.0
        %1090 = vmatprep.subr.mxu0 0.0
        %1091 = vmatpush1.xpose.msra.mxu0 0.0
        %1092 = vmatprep.subr.mxu0 0.0
        %1093 = vmatpush1.xpose.msra.mxu0 0.0
        %1094 = vmatprep.subr.mxu0 0.0
        %1095 = vmatpush1.xpose.msra.mxu0 0.0
        %1096 = vmatprep.subr.mxu0 0.0
        %1097 = vmatpush1.xpose.msra.mxu0 0.0
        %1098 = vmatprep.subr.mxu0 0.0
        %1099 = vmatpush1.xpose.msra.mxu0 0.0
        %1100 = vmatprep.subr.mxu0 0.0
        %1101 = vmatpush1.xpose.msra.mxu0 0.0
        %1102 = vmatprep.subr.mxu0 0.0
        %1103 = vmatpush1.xpose.msra.mxu0 0.0
        %1104 = vmatprep.subr.mxu0 0.0
        %1105 = vmatpush1.xpose.msra.mxu0 0.0
        %1106 = vmatprep.subr.mxu0 0.0
        %1107 = vmatpush1.xpose.msra.mxu0 0.0
        %1108 = vmatprep.subr.mxu0 0.0
        %1109 = vmatpush1.xpose.msra.mxu0 0.0
        %1110 = vmatprep.subr.mxu0 0.0
        %1111 = vmatpush1.xpose.msra.mxu0 0.0
        %1112 = vmatprep.subr.mxu0 0.0
        %1113 = vmatpush1.xpose.msra.mxu0 0.0
        %1114 = vmatprep.subr.mxu0 0.0
        %1115 = vmatpush1.xpose.msra.mxu0 0.0
        %1116 = vmatprep.subr.mxu0 0.0
        %1117 = vmatpush1.xpose.msra.mxu0 0.0
        %1118 = vmatprep.subr.mxu0 0.0
        %1119 = vmatpush1.xpose.msra.mxu0 0.0
        %1120 = vmatprep.subr.mxu0 0.0
        %1121 = vmatpush1.xpose.msra.mxu0 0.0
        %1122 = vmatprep.mubr.f32.mxu0 0.0
        %1123 = vmatmul.mubr.f32.gmra.mrb[0].mxu0 %v1054
        %v1124 = vpop.f32.mrb[0].mxu0
        %v1125 = vadd.f32 0.0, %v1124
        %v1126 = vpop.f32.mrb[0].mxu0
        %1127 = vdwg.mxu0
        %vm1128 = vcmp.eq.f32.partialorder %v874, 0.0
        %vm1129 = vcmp.eq.f32.partialorder %v875, 0.0
        %v1130 = vsel %vm1128, 1, 0
        %v1131 = vsel %vm1129, 1, 0
        %v1132 = vlaneseq
        %v1133 = vshrl.u32 %v1132, 7
        %v1134 = vsub.s32 0, %v1133
        %v1135 = vrot.slane %v1130, %v1134
        %v1136 = vlaneseq
        %v1137 = vshrl.u32 %v1136, 7
        %v1138 = vsub.s32 0, %v1137
        %v1139 = vrot.slane %v1131, %v1138
        %vm1140 = vcmp.eq.s32.totalorder %v1135, 1
        %vm1141 = vcmp.eq.s32.totalorder %v1139, 1
        %v1142 = vsel %vm1140, -1e+20, %v1047
        %v1143 = vsel %vm1141, -1e+20, %v1125
        %vm1144 = vcmask 64512
        %v1145 = vsel %vm1144, %v1142, -inf
        %1146 = vmax.xlane.f32.xlu0 %v1145
        %v1147 = vpop.xlane.xlu0 %1146
        %v1148 = vsel %vm1144, %v1143, -inf
        %1149 = vmax.xlane.f32.xlu0 %v1148
        %v1150 = vpop.xlane.xlu0 %1149
        %v1151 = vsub.f32 %v1142, %v1147
        %v1152 = vsub.f32 %v1143, %v1150
        %v1153 = vmul.f32 %v1151, 1.442695
        %v1154 = vpow.pop %v1153
        %v1155 = vmul.f32 %v1152, 1.442695
        %v1156 = vpow.pop %v1155
        %v1157 = vsel %vm1144, %v1154, 0.0
        %1158 = vadd.xlane.f32.xlu0 %v1157
        %v1159 = vpop.xlane.xlu0 %1158
        %v1160 = vsel %vm1144, %v1156, 0.0
        %1161 = vadd.xlane.f32.xlu0 %v1160
        %v1162 = vpop.xlane.xlu0 %1161
        %v1163 = vrcp.pop %v1159
        %v1164 = vmul.f32 %v1154, %v1163
        %v1165 = vrcp.pop %v1162
        %v1166 = vmul.f32 %v1156, %v1165
        %1167 = vrot.lane.b32.xlu0 %v961, 64
        %v1168 = vpop.permute.xlu0 %1167
        %v1171 = vsel %vm1144, %v1164, 0
        %1173 = vmatprep.subr.mxu0 0.0
        %1174 = vmatpush1.msra.mxu0 %v1168
        %1175 = vmatprep.subr.mxu0 0.0
        %1176 = vmatpush1.msra.mxu0 0.0
        %1177 = vmatprep.subr.mxu0 0.0
        %1178 = vmatpush1.msra.mxu0 0.0
        %1179 = vmatprep.subr.mxu0 0.0
        %1180 = vmatpush1.msra.mxu0 0.0
        %1181 = vmatprep.subr.mxu0 0.0
        %1182 = vmatpush1.msra.mxu0 0.0
        %1183 = vmatprep.subr.mxu0 0.0
        %1184 = vmatpush1.msra.mxu0 0.0
        %1185 = vmatprep.subr.mxu0 0.0
        %1186 = vmatpush1.msra.mxu0 0.0
        %1187 = vmatprep.subr.mxu0 0.0
        %1188 = vmatpush1.msra.mxu0 0.0
        %1189 = vmatprep.subr.mxu0 0.0
        %1190 = vmatpush1.msra.mxu0 0.0
        %1191 = vmatprep.subr.mxu0 0.0
        %1192 = vmatpush1.msra.mxu0 0.0
        %1193 = vmatprep.subr.mxu0 0.0
        %1194 = vmatpush1.msra.mxu0 0.0
        %1195 = vmatprep.subr.mxu0 0.0
        %1196 = vmatpush1.msra.mxu0 0.0
        %1197 = vmatprep.subr.mxu0 0.0
        %1198 = vmatpush1.msra.mxu0 0.0
        %1199 = vmatprep.subr.mxu0 0.0
        %1200 = vmatpush1.msra.mxu0 0.0
        %1201 = vmatprep.subr.mxu0 0.0
        %1202 = vmatpush1.msra.mxu0 0.0
        %1203 = vmatprep.subr.mxu0 0.0
        %1204 = vmatpush1.msra.mxu0 0.0
        %1205 = vmatprep.subr.mxu0 0.0
        %1206 = vmatpush1.msra.mxu0 0.0
        %1207 = vmatprep.subr.mxu0 0.0
        %1208 = vmatpush1.msra.mxu0 0.0
        %1209 = vmatprep.subr.mxu0 0.0
        %1210 = vmatpush1.msra.mxu0 0.0
        %1211 = vmatprep.subr.mxu0 0.0
        %1212 = vmatpush1.msra.mxu0 0.0
        %1213 = vmatprep.subr.mxu0 0.0
        %1214 = vmatpush1.msra.mxu0 0.0
        %1215 = vmatprep.subr.mxu0 0.0
        %1216 = vmatpush1.msra.mxu0 0.0
        %1217 = vmatprep.subr.mxu0 0.0
        %1218 = vmatpush1.msra.mxu0 0.0
        %1219 = vmatprep.subr.mxu0 0.0
        %1220 = vmatpush1.msra.mxu0 0.0
        %1221 = vmatprep.subr.mxu0 0.0
        %1222 = vmatpush1.msra.mxu0 0.0
        %1223 = vmatprep.subr.mxu0 0.0
        %1224 = vmatpush1.msra.mxu0 0.0
        %1225 = vmatprep.subr.mxu0 0.0
        %1226 = vmatpush1.msra.mxu0 0.0
        %1227 = vmatprep.subr.mxu0 0.0
        %1228 = vmatpush1.msra.mxu0 0.0
        %1229 = vmatprep.subr.mxu0 0.0
        %1230 = vmatpush1.msra.mxu0 0.0
        %1231 = vmatprep.subr.mxu0 0.0
        %1232 = vmatpush1.msra.mxu0 0.0
        %1233 = vmatprep.subr.mxu0 0.0
        %1234 = vmatpush1.msra.mxu0 0.0
        %1235 = vmatprep.subr.mxu0 0.0
        %1236 = vmatpush1.msra.mxu0 0.0
        %1237 = vmatprep.mubr.f32.mxu0 0.0
        %1238 = vmatmul.mubr.f32.gmra.mrb[0].mxu0 %v1171
        %v1239 = vpop.f32.mrb[0].mxu0
        %v1240 = vadd.f32 0.0, %v1239
        %v1241 = vpop.f32.mrb[0].mxu0
        %1242 = vdwg.mxu0
        %1243 = vrot.lane.b32.xlu0 %v966, 64
        %v1244 = vpop.permute.xlu0 %1243
        %v1247 = vsel %vm1144, %v1166, 0
        %1249 = vmatprep.subr.mxu0 0.0
        %1250 = vmatpush1.msra.mxu0 %v1244
        %1251 = vmatprep.subr.mxu0 0.0
        %1252 = vmatpush1.msra.mxu0 0.0
        %1253 = vmatprep.subr.mxu0 0.0
        %1254 = vmatpush1.msra.mxu0 0.0
        %1255 = vmatprep.subr.mxu0 0.0
        %1256 = vmatpush1.msra.mxu0 0.0
        %1257 = vmatprep.subr.mxu0 0.0
        %1258 = vmatpush1.msra.mxu0 0.0
        %1259 = vmatprep.subr.mxu0 0.0
        %1260 = vmatpush1.msra.mxu0 0.0
        %1261 = vmatprep.subr.mxu0 0.0
        %1262 = vmatpush1.msra.mxu0 0.0
        %1263 = vmatprep.subr.mxu0 0.0
        %1264 = vmatpush1.msra.mxu0 0.0
        %1265 = vmatprep.subr.mxu0 0.0
        %1266 = vmatpush1.msra.mxu0 0.0
        %1267 = vmatprep.subr.mxu0 0.0
        %1268 = vmatpush1.msra.mxu0 0.0
        %1269 = vmatprep.subr.mxu0 0.0
        %1270 = vmatpush1.msra.mxu0 0.0
        %1271 = vmatprep.subr.mxu0 0.0
        %1272 = vmatpush1.msra.mxu0 0.0
        %1273 = vmatprep.subr.mxu0 0.0
        %1274 = vmatpush1.msra.mxu0 0.0
        %1275 = vmatprep.subr.mxu0 0.0
        %1276 = vmatpush1.msra.mxu0 0.0
        %1277 = vmatprep.subr.mxu0 0.0
        %1278 = vmatpush1.msra.mxu0 0.0
        %1279 = vmatprep.subr.mxu0 0.0
        %1280 = vmatpush1.msra.mxu0 0.0
        %1281 = vmatprep.subr.mxu0 0.0
        %1282 = vmatpush1.msra.mxu0 0.0
        %1283 = vmatprep.subr.mxu0 0.0
        %1284 = vmatpush1.msra.mxu0 0.0
        %1285 = vmatprep.subr.mxu0 0.0
        %1286 = vmatpush1.msra.mxu0 0.0
        %1287 = vmatprep.subr.mxu0 0.0
        %1288 = vmatpush1.msra.mxu0 0.0
        %1289 = vmatprep.subr.mxu0 0.0
        %1290 = vmatpush1.msra.mxu0 0.0
        %1291 = vmatprep.subr.mxu0 0.0
        %1292 = vmatpush1.msra.mxu0 0.0
        %1293 = vmatprep.subr.mxu0 0.0
        %1294 = vmatpush1.msra.mxu0 0.0
        %1295 = vmatprep.subr.mxu0 0.0
        %1296 = vmatpush1.msra.mxu0 0.0
        %1297 = vmatprep.subr.mxu0 0.0
        %1298 = vmatpush1.msra.mxu0 0.0
        %1299 = vmatprep.subr.mxu0 0.0
        %1300 = vmatpush1.msra.mxu0 0.0
        %1301 = vmatprep.subr.mxu0 0.0
        %1302 = vmatpush1.msra.mxu0 0.0
        %1303 = vmatprep.subr.mxu0 0.0
        %1304 = vmatpush1.msra.mxu0 0.0
        %1305 = vmatprep.subr.mxu0 0.0
        %1306 = vmatpush1.msra.mxu0 0.0
        %1307 = vmatprep.subr.mxu0 0.0
        %1308 = vmatpush1.msra.mxu0 0.0
        %1309 = vmatprep.subr.mxu0 0.0
        %1310 = vmatpush1.msra.mxu0 0.0
        %1311 = vmatprep.subr.mxu0 0.0
        %1312 = vmatpush1.msra.mxu0 0.0
        %1313 = vmatprep.mubr.f32.mxu0 0.0
        %1314 = vmatmul.mubr.f32.gmra.mrb[0].mxu0 %v1247
        %v1315 = vpop.f32.mrb[0].mxu0
        %v1316 = vadd.f32 0.0, %v1315
        %v1317 = vpop.f32.mrb[0].mxu0
        %1318 = vdwg.mxu0
        %1319 = vrot.lane.b32.xlu0 %v969, 112
        %v1320 = vpop.permute.xlu0 %1319
        %1321 = vrot.lane.b32.xlu0 %v961, 80
        %v1322 = vpop.permute.xlu0 %1321
        %v1323 = vsel %vm974, %v1320, 0
        %v1325 = vsel %vm974, %v1322, 0
        %1327 = vmatprep.subr.mxu0 0.0
        %1328 = vmatpush1.xpose.msra.mxu0 %v1325
        %1329 = vmatprep.subr.mxu0 0.0
        %1330 = vmatpush1.xpose.msra.mxu0 0.0
        %1331 = vmatprep.subr.mxu0 0.0
        %1332 = vmatpush1.xpose.msra.mxu0 0.0
        %1333 = vmatprep.subr.mxu0 0.0
        %1334 = vmatpush1.xpose.msra.mxu0 0.0
        %1335 = vmatprep.subr.mxu0 0.0
        %1336 = vmatpush1.xpose.msra.mxu0 0.0
        %1337 = vmatprep.subr.mxu0 0.0
        %1338 = vmatpush1.xpose.msra.mxu0 0.0
        %1339 = vmatprep.subr.mxu0 0.0
        %1340 = vmatpush1.xpose.msra.mxu0 0.0
        %1341 = vmatprep.subr.mxu0 0.0
        %1342 = vmatpush1.xpose.msra.mxu0 0.0
        %1343 = vmatprep.subr.mxu0 0.0
        %1344 = vmatpush1.xpose.msra.mxu0 0.0
        %1345 = vmatprep.subr.mxu0 0.0
        %1346 = vmatpush1.xpose.msra.mxu0 0.0
        %1347 = vmatprep.subr.mxu0 0.0
        %1348 = vmatpush1.xpose.msra.mxu0 0.0
        %1349 = vmatprep.subr.mxu0 0.0
        %1350 = vmatpush1.xpose.msra.mxu0 0.0
        %1351 = vmatprep.subr.mxu0 0.0
        %1352 = vmatpush1.xpose.msra.mxu0 0.0
        %1353 = vmatprep.subr.mxu0 0.0
        %1354 = vmatpush1.xpose.msra.mxu0 0.0
        %1355 = vmatprep.subr.mxu0 0.0
        %1356 = vmatpush1.xpose.msra.mxu0 0.0
        %1357 = vmatprep.subr.mxu0 0.0
        %1358 = vmatpush1.xpose.msra.mxu0 0.0
        %1359 = vmatprep.subr.mxu0 0.0
        %1360 = vmatpush1.xpose.msra.mxu0 0.0
        %1361 = vmatprep.subr.mxu0 0.0
        %1362 = vmatpush1.xpose.msra.mxu0 0.0
        %1363 = vmatprep.subr.mxu0 0.0
        %1364 = vmatpush1.xpose.msra.mxu0 0.0
        %1365 = vmatprep.subr.mxu0 0.0
        %1366 = vmatpush1.xpose.msra.mxu0 0.0
        %1367 = vmatprep.subr.mxu0 0.0
        %1368 = vmatpush1.xpose.msra.mxu0 0.0
        %1369 = vmatprep.subr.mxu0 0.0
        %1370 = vmatpush1.xpose.msra.mxu0 0.0
        %1371 = vmatprep.subr.mxu0 0.0
        %1372 = vmatpush1.xpose.msra.mxu0 0.0
        %1373 = vmatprep.subr.mxu0 0.0
        %1374 = vmatpush1.xpose.msra.mxu0 0.0
        %1375 = vmatprep.subr.mxu0 0.0
        %1376 = vmatpush1.xpose.msra.mxu0 0.0
        %1377 = vmatprep.subr.mxu0 0.0
        %1378 = vmatpush1.xpose.msra.mxu0 0.0
        %1379 = vmatprep.subr.mxu0 0.0
        %1380 = vmatpush1.xpose.msra.mxu0 0.0
        %1381 = vmatprep.subr.mxu0 0.0
        %1382 = vmatpush1.xpose.msra.mxu0 0.0
        %1383 = vmatprep.subr.mxu0 0.0
        %1384 = vmatpush1.xpose.msra.mxu0 0.0
        %1385 = vmatprep.subr.mxu0 0.0
        %1386 = vmatpush1.xpose.msra.mxu0 0.0
        %1387 = vmatprep.subr.mxu0 0.0
        %1388 = vmatpush1.xpose.msra.mxu0 0.0
        %1389 = vmatprep.subr.mxu0 0.0
        %1390 = vmatpush1.xpose.msra.mxu0 0.0
        %1391 = vmatprep.mubr.f32.mxu0 0.0
        %1392 = vmatmul.mubr.f32.gmra.mrb[0].mxu0 %v1323
        %v1393 = vpop.f32.mrb[0].mxu0
        %v1394 = vadd.f32 0.0, %v1393
        %v1395 = vpop.f32.mrb[0].mxu0
        %1396 = vdwg.mxu0
        %1397 = vrot.lane.b32.xlu0 %v970, 112
        %v1398 = vpop.permute.xlu0 %1397
        %1399 = vrot.lane.b32.xlu0 %v966, 80
        %v1400 = vpop.permute.xlu0 %1399
        %v1401 = vsel %vm974, %v1398, 0
        %v1403 = vsel %vm974, %v1400, 0
        %1405 = vmatprep.subr.mxu0 0.0
        %1406 = vmatpush1.xpose.msra.mxu0 %v1403
        %1407 = vmatprep.subr.mxu0 0.0
        %1408 = vmatpush1.xpose.msra.mxu0 0.0
        %1409 = vmatprep.subr.mxu0 0.0
        %1410 = vmatpush1.xpose.msra.mxu0 0.0
        %1411 = vmatprep.subr.mxu0 0.0
        %1412 = vmatpush1.xpose.msra.mxu0 0.0
        %1413 = vmatprep.subr.mxu0 0.0
        %1414 = vmatpush1.xpose.msra.mxu0 0.0
        %1415 = vmatprep.subr.mxu0 0.0
        %1416 = vmatpush1.xpose.msra.mxu0 0.0
        %1417 = vmatprep.subr.mxu0 0.0
        %1418 = vmatpush1.xpose.msra.mxu0 0.0
        %1419 = vmatprep.subr.mxu0 0.0
        %1420 = vmatpush1.xpose.msra.mxu0 0.0
        %1421 = vmatprep.subr.mxu0 0.0
        %1422 = vmatpush1.xpose.msra.mxu0 0.0
        %1423 = vmatprep.subr.mxu0 0.0
        %1424 = vmatpush1.xpose.msra.mxu0 0.0
        %1425 = vmatprep.subr.mxu0 0.0
        %1426 = vmatpush1.xpose.msra.mxu0 0.0
        %1427 = vmatprep.subr.mxu0 0.0
        %1428 = vmatpush1.xpose.msra.mxu0 0.0
        %1429 = vmatprep.subr.mxu0 0.0
        %1430 = vmatpush1.xpose.msra.mxu0 0.0
        %1431 = vmatprep.subr.mxu0 0.0
        %1432 = vmatpush1.xpose.msra.mxu0 0.0
        %1433 = vmatprep.subr.mxu0 0.0
        %1434 = vmatpush1.xpose.msra.mxu0 0.0
        %1435 = vmatprep.subr.mxu0 0.0
        %1436 = vmatpush1.xpose.msra.mxu0 0.0
        %1437 = vmatprep.subr.mxu0 0.0
        %1438 = vmatpush1.xpose.msra.mxu0 0.0
        %1439 = vmatprep.subr.mxu0 0.0
        %1440 = vmatpush1.xpose.msra.mxu0 0.0
        %1441 = vmatprep.subr.mxu0 0.0
        %1442 = vmatpush1.xpose.msra.mxu0 0.0
        %1443 = vmatprep.subr.mxu0 0.0
        %1444 = vmatpush1.xpose.msra.mxu0 0.0
        %1445 = vmatprep.subr.mxu0 0.0
        %1446 = vmatpush1.xpose.msra.mxu0 0.0
        %1447 = vmatprep.subr.mxu0 0.0
        %1448 = vmatpush1.xpose.msra.mxu0 0.0
        %1449 = vmatprep.subr.mxu0 0.0
        %1450 = vmatpush1.xpose.msra.mxu0 0.0
        %1451 = vmatprep.subr.mxu0 0.0
        %1452 = vmatpush1.xpose.msra.mxu0 0.0
        %1453 = vmatprep.subr.mxu0 0.0
        %1454 = vmatpush1.xpose.msra.mxu0 0.0
        %1455 = vmatprep.subr.mxu0 0.0
        %1456 = vmatpush1.xpose.msra.mxu0 0.0
        %1457 = vmatprep.subr.mxu0 0.0
        %1458 = vmatpush1.xpose.msra.mxu0 0.0
        %1459 = vmatprep.subr.mxu0 0.0
        %1460 = vmatpush1.xpose.msra.mxu0 0.0
        %1461 = vmatprep.subr.mxu0 0.0
        %1462 = vmatpush1.xpose.msra.mxu0 0.0
        %1463 = vmatprep.subr.mxu0 0.0
        %1464 = vmatpush1.xpose.msra.mxu0 0.0
        %1465 = vmatprep.subr.mxu0 0.0
        %1466 = vmatpush1.xpose.msra.mxu0 0.0
        %1467 = vmatprep.subr.mxu0 0.0
        %1468 = vmatpush1.xpose.msra.mxu0 0.0
        %1469 = vmatprep.mubr.f32.mxu0 0.0
        %1470 = vmatmul.mubr.f32.gmra.mrb[0].mxu0 %v1401
        %v1471 = vpop.f32.mrb[0].mxu0
        %v1472 = vadd.f32 0.0, %v1471
        %v1473 = vpop.f32.mrb[0].mxu0
        %1474 = vdwg.mxu0
        %v1475 = vsel %vm1140, -1e+20, %v1394
        %v1476 = vsel %vm1141, -1e+20, %v1472
        %v1477 = vsel %vm1144, %v1475, -inf
        %1478 = vmax.xlane.f32.xlu0 %v1477
        %v1479 = vpop.xlane.xlu0 %1478
        %v1480 = vsel %vm1144, %v1476, -inf
        %1481 = vmax.xlane.f32.xlu0 %v1480
        %v1482 = vpop.xlane.xlu0 %1481
        %v1483 = vsub.f32 %v1475, %v1479
        %v1484 = vsub.f32 %v1476, %v1482
        %v1485 = vmul.f32 %v1483, 1.442695
        %v1486 = vpow.pop %v1485
        %v1487 = vmul.f32 %v1484, 1.442695
        %v1488 = vpow.pop %v1487
        %v1489 = vsel %vm1144, %v1486, 0.0
        %1490 = vadd.xlane.f32.xlu0 %v1489
        %v1491 = vpop.xlane.xlu0 %1490
        %v1492 = vsel %vm1144, %v1488, 0.0
        %1493 = vadd.xlane.f32.xlu0 %v1492
        %v1494 = vpop.xlane.xlu0 %1493
        %v1495 = vrcp.pop %v1491
        %v1496 = vmul.f32 %v1486, %v1495
        %v1497 = vrcp.pop %v1494
        %v1498 = vmul.f32 %v1488, %v1497
        %1499 = vrot.lane.b32.xlu0 %v961, 48
        %v1500 = vpop.permute.xlu0 %1499
        %v1503 = vsel %vm1144, %v1496, 0
        %1505 = vmatprep.subr.mxu0 0.0
        %1506 = vmatpush1.msra.mxu0 %v1500
        %1507 = vmatprep.subr.mxu0 0.0
        %1508 = vmatpush1.msra.mxu0 0.0
        %1509 = vmatprep.subr.mxu0 0.0
        %1510 = vmatpush1.msra.mxu0 0.0
        %1511 = vmatprep.subr.mxu0 0.0
        %1512 = vmatpush1.msra.mxu0 0.0
        %1513 = vmatprep.subr.mxu0 0.0
        %1514 = vmatpush1.msra.mxu0 0.0
        %1515 = vmatprep.subr.mxu0 0.0
        %1516 = vmatpush1.msra.mxu0 0.0
        %1517 = vmatprep.subr.mxu0 0.0
        %1518 = vmatpush1.msra.mxu0 0.0
        %1519 = vmatprep.subr.mxu0 0.0
        %1520 = vmatpush1.msra.mxu0 0.0
        %1521 = vmatprep.subr.mxu0 0.0
        %1522 = vmatpush1.msra.mxu0 0.0
        %1523 = vmatprep.subr.mxu0 0.0
        %1524 = vmatpush1.msra.mxu0 0.0
        %1525 = vmatprep.subr.mxu0 0.0
        %1526 = vmatpush1.msra.mxu0 0.0
        %1527 = vmatprep.subr.mxu0 0.0
        %1528 = vmatpush1.msra.mxu0 0.0
        %1529 = vmatprep.subr.mxu0 0.0
        %1530 = vmatpush1.msra.mxu0 0.0
        %1531 = vmatprep.subr.mxu0 0.0
        %1532 = vmatpush1.msra.mxu0 0.0
        %1533 = vmatprep.subr.mxu0 0.0
        %1534 = vmatpush1.msra.mxu0 0.0
        %1535 = vmatprep.subr.mxu0 0.0
        %1536 = vmatpush1.msra.mxu0 0.0
        %1537 = vmatprep.subr.mxu0 0.0
        %1538 = vmatpush1.msra.mxu0 0.0
        %1539 = vmatprep.subr.mxu0 0.0
        %1540 = vmatpush1.msra.mxu0 0.0
        %1541 = vmatprep.subr.mxu0 0.0
        %1542 = vmatpush1.msra.mxu0 0.0
        %1543 = vmatprep.subr.mxu0 0.0
        %1544 = vmatpush1.msra.mxu0 0.0
        %1545 = vmatprep.subr.mxu0 0.0
        %1546 = vmatpush1.msra.mxu0 0.0
        %1547 = vmatprep.subr.mxu0 0.0
        %1548 = vmatpush1.msra.mxu0 0.0
        %1549 = vmatprep.subr.mxu0 0.0
        %1550 = vmatpush1.msra.mxu0 0.0
        %1551 = vmatprep.subr.mxu0 0.0
        %1552 = vmatpush1.msra.mxu0 0.0
        %1553 = vmatprep.subr.mxu0 0.0
        %1554 = vmatpush1.msra.mxu0 0.0
        %1555 = vmatprep.subr.mxu0 0.0
        %1556 = vmatpush1.msra.mxu0 0.0
        %1557 = vmatprep.subr.mxu0 0.0
        %1558 = vmatpush1.msra.mxu0 0.0
        %1559 = vmatprep.subr.mxu0 0.0
        %1560 = vmatpush1.msra.mxu0 0.0
        %1561 = vmatprep.subr.mxu0 0.0
        %1562 = vmatpush1.msra.mxu0 0.0
        %1563 = vmatprep.subr.mxu0 0.0
        %1564 = vmatpush1.msra.mxu0 0.0
        %1565 = vmatprep.subr.mxu0 0.0
        %1566 = vmatpush1.msra.mxu0 0.0
        %1567 = vmatprep.subr.mxu0 0.0
        %1568 = vmatpush1.msra.mxu0 0.0
        %1569 = vmatprep.mubr.f32.mxu0 0.0
        %1570 = vmatmul.mubr.f32.gmra.mrb[0].mxu0 %v1503
        %v1571 = vpop.f32.mrb[0].mxu0
        %v1572 = vadd.f32 0.0, %v1571
        %v1573 = vpop.f32.mrb[0].mxu0
        %1574 = vdwg.mxu0
        %1575 = vrot.lane.b32.xlu0 %v966, 48
        %v1576 = vpop.permute.xlu0 %1575
        %v1579 = vsel %vm1144, %v1498, 0
        %1581 = vmatprep.subr.mxu0 0.0
        %1582 = vmatpush1.msra.mxu0 %v1576
        %1583 = vmatprep.subr.mxu0 0.0
        %1584 = vmatpush1.msra.mxu0 0.0
        %1585 = vmatprep.subr.mxu0 0.0
        %1586 = vmatpush1.msra.mxu0 0.0
        %1587 = vmatprep.subr.mxu0 0.0
        %1588 = vmatpush1.msra.mxu0 0.0
        %1589 = vmatprep.subr.mxu0 0.0
        %1590 = vmatpush1.msra.mxu0 0.0
        %1591 = vmatprep.subr.mxu0 0.0
        %1592 = vmatpush1.msra.mxu0 0.0
        %1593 = vmatprep.subr.mxu0 0.0
        %1594 = vmatpush1.msra.mxu0 0.0
        %1595 = vmatprep.subr.mxu0 0.0
        %1596 = vmatpush1.msra.mxu0 0.0
        %1597 = vmatprep.subr.mxu0 0.0
        %1598 = vmatpush1.msra.mxu0 0.0
        %1599 = vmatprep.subr.mxu0 0.0
        %1600 = vmatpush1.msra.mxu0 0.0
        %1601 = vmatprep.subr.mxu0 0.0
        %1602 = vmatpush1.msra.mxu0 0.0
        %1603 = vmatprep.subr.mxu0 0.0
        %1604 = vmatpush1.msra.mxu0 0.0
        %1605 = vmatprep.subr.mxu0 0.0
        %1606 = vmatpush1.msra.mxu0 0.0
        %1607 = vmatprep.subr.mxu0 0.0
        %1608 = vmatpush1.msra.mxu0 0.0
        %1609 = vmatprep.subr.mxu0 0.0
        %1610 = vmatpush1.msra.mxu0 0.0
        %1611 = vmatprep.subr.mxu0 0.0
        %1612 = vmatpush1.msra.mxu0 0.0
        %1613 = vmatprep.subr.mxu0 0.0
        %1614 = vmatpush1.msra.mxu0 0.0
        %1615 = vmatprep.subr.mxu0 0.0
        %1616 = vmatpush1.msra.mxu0 0.0
        %1617 = vmatprep.subr.mxu0 0.0
        %1618 = vmatpush1.msra.mxu0 0.0
        %1619 = vmatprep.subr.mxu0 0.0
        %1620 = vmatpush1.msra.mxu0 0.0
        %1621 = vmatprep.subr.mxu0 0.0
        %1622 = vmatpush1.msra.mxu0 0.0
        %1623 = vmatprep.subr.mxu0 0.0
        %1624 = vmatpush1.msra.mxu0 0.0
        %1625 = vmatprep.subr.mxu0 0.0
        %1626 = vmatpush1.msra.mxu0 0.0
        %1627 = vmatprep.subr.mxu0 0.0
        %1628 = vmatpush1.msra.mxu0 0.0
        %1629 = vmatprep.subr.mxu0 0.0
        %1630 = vmatpush1.msra.mxu0 0.0
        %1631 = vmatprep.subr.mxu0 0.0
        %1632 = vmatpush1.msra.mxu0 0.0
        %1633 = vmatprep.subr.mxu0 0.0
        %1634 = vmatpush1.msra.mxu0 0.0
        %1635 = vmatprep.subr.mxu0 0.0
        %1636 = vmatpush1.msra.mxu0 0.0
        %1637 = vmatprep.subr.mxu0 0.0
        %1638 = vmatpush1.msra.mxu0 0.0
        %1639 = vmatprep.subr.mxu0 0.0
        %1640 = vmatpush1.msra.mxu0 0.0
        %1641 = vmatprep.subr.mxu0 0.0
        %1642 = vmatpush1.msra.mxu0 0.0
        %1643 = vmatprep.subr.mxu0 0.0
        %1644 = vmatpush1.msra.mxu0 0.0
        %1645 = vmatprep.mubr.f32.mxu0 0.0
        %1646 = vmatmul.mubr.f32.gmra.mrb[0].mxu0 %v1579
        %v1647 = vpop.f32.mrb[0].mxu0
        %v1648 = vadd.f32 0.0, %v1647
        %v1649 = vpop.f32.mrb[0].mxu0
        %1650 = vdwg.mxu0
        %1653 = vrot.lane.b32.xlu0 %v1572, 16
        %v1654 = vpop.permute.xlu0 %1653
        %1655 = vrot.lane.b32.xlu0 %v1648, 16
        %v1656 = vpop.permute.xlu0 %1655
        %v1659 = vsel %vm974, %v1240, %v1654
        %v1660 = vsel %vm974, %v1316, %v1656
        %v1661 = vld [vmem:[%s839] sm:$0xff]
        %v1662 = vld [vmem:[%s839 + $0x8] sm:$0xff]
        %v1663 = vld [vmem:[%s839 + $0x10] sm:$0xff]
        %v1664 = vld [vmem:[%s839 + $0x18] sm:$0xff]
        %v1665 = vld [vmem:[%s842] sm:$0x1]
        %v1667 = vlaneseq
        %v1668 = vshrl.u32 %v1667, 7
        %v1669 = vsub.s32 0, %v1668
        %v1670 = vrot.slane %v1665, %v1669
        %v1673 = vsel %vm887, %v1659, 0
        %v1676 = vsel %vm887, %v1660, 0
        %1678 = vmatprep.subr.mxu0 0.0
        %1679 = vmatpush1.msra.mxu0 %v1661
        %1680 = vmatprep.subr.mxu0 0.0
        %1681 = vmatpush1.msra.mxu0 %v1662
        %1682 = vmatprep.subr.mxu0 0.0
        %1683 = vmatpush1.msra.mxu0 %v1663
        %1684 = vmatprep.subr.mxu0 0.0
        %1685 = vmatpush1.msra.mxu0 %v1664
        %1686 = vmatprep.subr.mxu0 0.0
        %1687 = vmatpush1.msra.mxu0 0.0
        %1688 = vmatprep.subr.mxu0 0.0
        %1689 = vmatpush1.msra.mxu0 0.0
        %1690 = vmatprep.subr.mxu0 0.0
        %1691 = vmatpush1.msra.mxu0 0.0
        %1692 = vmatprep.subr.mxu0 0.0
        %1693 = vmatpush1.msra.mxu0 0.0
        %1694 = vmatprep.subr.mxu0 0.0
        %1695 = vmatpush1.msra.mxu0 0.0
        %1696 = vmatprep.subr.mxu0 0.0
        %1697 = vmatpush1.msra.mxu0 0.0
        %1698 = vmatprep.subr.mxu0 0.0
        %1699 = vmatpush1.msra.mxu0 0.0
        %1700 = vmatprep.subr.mxu0 0.0
        %1701 = vmatpush1.msra.mxu0 0.0
        %1702 = vmatprep.subr.mxu0 0.0
        %1703 = vmatpush1.msra.mxu0 0.0
        %1704 = vmatprep.subr.mxu0 0.0
        %1705 = vmatpush1.msra.mxu0 0.0
        %1706 = vmatprep.subr.mxu0 0.0
        %1707 = vmatpush1.msra.mxu0 0.0
        %1708 = vmatprep.subr.mxu0 0.0
        %1709 = vmatpush1.msra.mxu0 0.0
        %1710 = vmatprep.subr.mxu0 0.0
        %1711 = vmatpush1.msra.mxu0 0.0
        %1712 = vmatprep.subr.mxu0 0.0
        %1713 = vmatpush1.msra.mxu0 0.0
        %1714 = vmatprep.subr.mxu0 0.0
        %1715 = vmatpush1.msra.mxu0 0.0
        %1716 = vmatprep.subr.mxu0 0.0
        %1717 = vmatpush1.msra.mxu0 0.0
        %1718 = vmatprep.subr.mxu0 0.0
        %1719 = vmatpush1.msra.mxu0 0.0
        %1720 = vmatprep.subr.mxu0 0.0
        %1721 = vmatpush1.msra.mxu0 0.0
        %1722 = vmatprep.subr.mxu0 0.0
        %1723 = vmatpush1.msra.mxu0 0.0
        %1724 = vmatprep.subr.mxu0 0.0
        %1725 = vmatpush1.msra.mxu0 0.0
        %1726 = vmatprep.subr.mxu0 0.0
        %1727 = vmatpush1.msra.mxu0 0.0
        %1728 = vmatprep.subr.mxu0 0.0
        %1729 = vmatpush1.msra.mxu0 0.0
        %1730 = vmatprep.subr.mxu0 0.0
        %1731 = vmatpush1.msra.mxu0 0.0
        %1732 = vmatprep.subr.mxu0 0.0
        %1733 = vmatpush1.msra.mxu0 0.0
        %1734 = vmatprep.subr.mxu0 0.0
        %1735 = vmatpush1.msra.mxu0 0.0
        %1736 = vmatprep.subr.mxu0 0.0
        %1737 = vmatpush1.msra.mxu0 0.0
        %1738 = vmatprep.subr.mxu0 0.0
        %1739 = vmatpush1.msra.mxu0 0.0
        %1740 = vmatprep.subr.mxu0 0.0
        %1741 = vmatpush1.msra.mxu0 0.0
        %1742 = vmatprep.mubr.f32.mxu0 0.0
        %1743 = vmatmul.mubr.f32.gmra.mrb[0].mxu0 %v1673
        %v1744 = vpop.f32.mrb[0].mxu0
        %v1745 = vadd.f32 %v1670, %v1744
        %v1746 = vpop.f32.mrb[0].mxu0
        %1747 = vmatprep.mubr.f32.mxu0 0.0
        %1748 = vmatmul.mubr.f32.gmra.mrb[0].mxu0 %v1676
        %v1749 = vpop.f32.mrb[0].mxu0
        %v1750 = vadd.f32 %v1670, %v1749
        %v1751 = vpop.f32.mrb[0].mxu0
        %1752 = vdwg.mxu0
        %v1753 = vadd.f32 %v872, %v1745
        %v1754 = vadd.f32 %v873, %v1750
        %v1755 = vld [vmem:[%s845] sm:$0x1]
        %v1756 = vld [vmem:[%s848] sm:$0x1]
        %v1757 = vsel %vm887, %v1753, 0.0
        %1758 = vadd.xlane.f32.xlu0 %v1757
        %v1759 = vpop.xlane.xlu0 %1758
        %v1760 = vsel %vm887, %v1754, 0.0
        %1761 = vadd.xlane.f32.xlu0 %v1760
        %v1762 = vpop.xlane.xlu0 %1761
        %v1763 = vrcp.pop 32.0
        %v1764 = vmul.f32 %v1759, %v1763
        %v1765 = vmul.f32 %v1762, %v1763
        %v1766 = vsub.f32 %v1753, %v1764
        %v1767 = vsub.f32 %v1754, %v1765
        %v1768 = vmul.f32 %v1766, %v1766
        %v1769 = vmul.f32 %v1767, %v1767
        %v1770 = vsel %vm887, %v1768, 0.0
        %1771 = vadd.xlane.f32.xlu0 %v1770
        %v1772 = vpop.xlane.xlu0 %1771
        %v1773 = vsel %vm887, %v1769, 0.0
        %1774 = vadd.xlane.f32.xlu0 %v1773
        %v1775 = vpop.xlane.xlu0 %1774
        %v1776 = vmul.f32 %v1772, %v1763
        %v1777 = vmul.f32 %v1775, %v1763
        %v1778 = vadd.f32 %v1776, 1e-05
        %v1779 = vadd.f32 %v1777, 1e-05
        %v1780 = vrsqrt.pop %v1778
        %v1781 = vrsqrt.pop %v1779
        %v1782 = vmul.f32 %v1766, %v1780
        %v1783 = vmul.f32 %v1767, %v1781
        %v1785 = vlaneseq
        %v1786 = vshrl.u32 %v1785, 7
        %v1787 = vsub.s32 0, %v1786
        %v1788 = vrot.slane %v1755, %v1787
        %v1790 = vmul.f32 %v1782, %v1788
        %v1791 = vmul.f32 %v1783, %v1788
        %v1793 = vlaneseq
        %v1794 = vshrl.u32 %v1793, 7
        %v1795 = vsub.s32 0, %v1794
        %v1796 = vrot.slane %v1756, %v1795
        %v1798 = vadd.f32 %v1790, %v1796
        %v1799 = vadd.f32 %v1791, %v1796
        %v1800 = vld [vmem:[%s853] sm:$0xff]
        %v1801 = vld [vmem:[%s853 + $0x8] sm:$0xff]
        %v1802 = vld [vmem:[%s853 + $0x10] sm:$0xff]
        %v1803 = vld [vmem:[%s853 + $0x18] sm:$0xff]
        %v1804 = vld [vmem:[%s856] sm:$0x1]
        %v1806 = vlaneseq
        %v1807 = vshrl.u32 %v1806, 7
        %v1808 = vsub.s32 0, %v1807
        %v1809 = vrot.slane %v1804, %v1808
        %v1812 = vsel %vm887, %v1798, 0
        %v1815 = vsel %vm887, %v1799, 0
        %1817 = vmatprep.subr.mxu0 0.0
        %1818 = vmatpush1.msra.mxu0 %v1800
        %1819 = vmatprep.subr.mxu0 0.0
        %1820 = vmatpush1.msra.mxu0 %v1801
        %1821 = vmatprep.subr.mxu0 0.0
        %1822 = vmatpush1.msra.mxu0 %v1802
        %1823 = vmatprep.subr.mxu0 0.0
        %1824 = vmatpush1.msra.mxu0 %v1803
        %1825 = vmatprep.subr.mxu0 0.0
        %1826 = vmatpush1.msra.mxu0 0.0
        %1827 = vmatprep.subr.mxu0 0.0
        %1828 = vmatpush1.msra.mxu0 0.0
        %1829 = vmatprep.subr.mxu0 0.0
        %1830 = vmatpush1.msra.mxu0 0.0
        %1831 = vmatprep.subr.mxu0 0.0
        %1832 = vmatpush1.msra.mxu0 0.0
        %1833 = vmatprep.subr.mxu0 0.0
        %1834 = vmatpush1.msra.mxu0 0.0
        %1835 = vmatprep.subr.mxu0 0.0
        %1836 = vmatpush1.msra.mxu0 0.0
        %1837 = vmatprep.subr.mxu0 0.0
        %1838 = vmatpush1.msra.mxu0 0.0
        %1839 = vmatprep.subr.mxu0 0.0
        %1840 = vmatpush1.msra.mxu0 0.0
        %1841 = vmatprep.subr.mxu0 0.0
        %1842 = vmatpush1.msra.mxu0 0.0
        %1843 = vmatprep.subr.mxu0 0.0
        %1844 = vmatpush1.msra.mxu0 0.0
        %1845 = vmatprep.subr.mxu0 0.0
        %1846 = vmatpush1.msra.mxu0 0.0
        %1847 = vmatprep.subr.mxu0 0.0
        %1848 = vmatpush1.msra.mxu0 0.0
        %1849 = vmatprep.subr.mxu0 0.0
        %1850 = vmatpush1.msra.mxu0 0.0
        %1851 = vmatprep.subr.mxu0 0.0
        %1852 = vmatpush1.msra.mxu0 0.0
        %1853 = vmatprep.subr.mxu0 0.0
        %1854 = vmatpush1.msra.mxu0 0.0
        %1855 = vmatprep.subr.mxu0 0.0
        %1856 = vmatpush1.msra.mxu0 0.0
        %1857 = vmatprep.subr.mxu0 0.0
        %1858 = vmatpush1.msra.mxu0 0.0
        %1859 = vmatprep.subr.mxu0 0.0
        %1860 = vmatpush1.msra.mxu0 0.0
        %1861 = vmatprep.subr.mxu0 0.0
        %1862 = vmatpush1.msra.mxu0 0.0
        %1863 = vmatprep.subr.mxu0 0.0
        %1864 = vmatpush1.msra.mxu0 0.0
        %1865 = vmatprep.subr.mxu0 0.0
        %1866 = vmatpush1.msra.mxu0 0.0
        %1867 = vmatprep.subr.mxu0 0.0
        %1868 = vmatpush1.msra.mxu0 0.0
        %1869 = vmatprep.subr.mxu0 0.0
        %1870 = vmatpush1.msra.mxu0 0.0
        %1871 = vmatprep.subr.mxu0 0.0
        %1872 = vmatpush1.msra.mxu0 0.0
        %1873 = vmatprep.subr.mxu0 0.0
        %1874 = vmatpush1.msra.mxu0 0.0
        %1875 = vmatprep.subr.mxu0 0.0
        %1876 = vmatpush1.msra.mxu0 0.0
        %1877 = vmatprep.subr.mxu0 0.0
        %1878 = vmatpush1.msra.mxu0 0.0
        %1879 = vmatprep.subr.mxu0 0.0
        %1880 = vmatpush1.msra.mxu0 0.0
        %1881 = vmatprep.mubr.f32.mxu0 0.0
        %1882 = vmatmul.mubr.f32.gmra.mrb[0].mxu0 %v1812
        %v1883 = vpop.f32.mrb[0].mxu0
        %v1884 = vadd.f32 %v1809, %v1883
        %v1885 = vpop.f32.mrb[0].mxu0
        %1886 = vmatprep.mubr.f32.mxu0 0.0
        %1887 = vmatmul.mubr.f32.gmra.mrb[0].mxu0 %v1815
        %v1888 = vpop.f32.mrb[0].mxu0
        %v1889 = vadd.f32 %v1809, %v1888
        %v1890 = vpop.f32.mrb[0].mxu0
        %1891 = vdwg.mxu0
        %v1892 = vmax.f32 %v1884, 0.0
        %v1893 = vmax.f32 %v1889, 0.0
        %v1894 = vld [vmem:[%s861] sm:$0xff]
        %v1895 = vld [vmem:[%s861 + $0x8] sm:$0xff]
        %v1896 = vld [vmem:[%s861 + $0x10] sm:$0xff]
        %v1897 = vld [vmem:[%s861 + $0x18] sm:$0xff]
        %v1898 = vld [vmem:[%s861 + $0x20] sm:$0xff]
        %v1899 = vld [vmem:[%s861 + $0x28] sm:$0xff]
        %v1900 = vld [vmem:[%s861 + $0x30] sm:$0xff]
        %v1901 = vld [vmem:[%s861 + $0x38] sm:$0xff]
        %v1902 = vld [vmem:[%s697] sm:$0x1]
        %v1904 = vlaneseq
        %v1905 = vshrl.u32 %v1904, 7
        %v1906 = vsub.s32 0, %v1905
        %v1907 = vrot.slane %v1902, %v1906
        %vm1909 = vcmask 523264
        %v1911 = vsel %vm1909, %v1892, 0
        %v1914 = vsel %vm1909, %v1893, 0
        %1916 = vmatprep.subr.mxu0 0.0
        %1917 = vmatpush1.msra.mxu0 %v1894
        %1918 = vmatprep.subr.mxu0 0.0
        %1919 = vmatpush1.msra.mxu0 %v1895
        %1920 = vmatprep.subr.mxu0 0.0
        %1921 = vmatpush1.msra.mxu0 %v1896
        %1922 = vmatprep.subr.mxu0 0.0
        %1923 = vmatpush1.msra.mxu0 %v1897
        %1924 = vmatprep.subr.mxu0 0.0
        %1925 = vmatpush1.msra.mxu0 %v1898
        %1926 = vmatprep.subr.mxu0 0.0
        %1927 = vmatpush1.msra.mxu0 %v1899
        %1928 = vmatprep.subr.mxu0 0.0
        %1929 = vmatpush1.msra.mxu0 %v1900
        %1930 = vmatprep.subr.mxu0 0.0
        %1931 = vmatpush1.msra.mxu0 %v1901
        %1932 = vmatprep.subr.mxu0 0.0
        %1933 = vmatpush1.msra.mxu0 0.0
        %1934 = vmatprep.subr.mxu0 0.0
        %1935 = vmatpush1.msra.mxu0 0.0
        %1936 = vmatprep.subr.mxu0 0.0
        %1937 = vmatpush1.msra.mxu0 0.0
        %1938 = vmatprep.subr.mxu0 0.0
        %1939 = vmatpush1.msra.mxu0 0.0
        %1940 = vmatprep.subr.mxu0 0.0
        %1941 = vmatpush1.msra.mxu0 0.0
        %1942 = vmatprep.subr.mxu0 0.0
        %1943 = vmatpush1.msra.mxu0 0.0
        %1944 = vmatprep.subr.mxu0 0.0
        %1945 = vmatpush1.msra.mxu0 0.0
        %1946 = vmatprep.subr.mxu0 0.0
        %1947 = vmatpush1.msra.mxu0 0.0
        %1948 = vmatprep.subr.mxu0 0.0
        %1949 = vmatpush1.msra.mxu0 0.0
        %1950 = vmatprep.subr.mxu0 0.0
        %1951 = vmatpush1.msra.mxu0 0.0
        %1952 = vmatprep.subr.mxu0 0.0
        %1953 = vmatpush1.msra.mxu0 0.0
        %1954 = vmatprep.subr.mxu0 0.0
        %1955 = vmatpush1.msra.mxu0 0.0
        %1956 = vmatprep.subr.mxu0 0.0
        %1957 = vmatpush1.msra.mxu0 0.0
        %1958 = vmatprep.subr.mxu0 0.0
        %1959 = vmatpush1.msra.mxu0 0.0
        %1960 = vmatprep.subr.mxu0 0.0
        %1961 = vmatpush1.msra.mxu0 0.0
        %1962 = vmatprep.subr.mxu0 0.0
        %1963 = vmatpush1.msra.mxu0 0.0
        %1964 = vmatprep.subr.mxu0 0.0
        %1965 = vmatpush1.msra.mxu0 0.0
        %1966 = vmatprep.subr.mxu0 0.0
        %1967 = vmatpush1.msra.mxu0 0.0
        %1968 = vmatprep.subr.mxu0 0.0
        %1969 = vmatpush1.msra.mxu0 0.0
        %1970 = vmatprep.subr.mxu0 0.0
        %1971 = vmatpush1.msra.mxu0 0.0
        %1972 = vmatprep.subr.mxu0 0.0
        %1973 = vmatpush1.msra.mxu0 0.0
        %1974 = vmatprep.subr.mxu0 0.0
        %1975 = vmatpush1.msra.mxu0 0.0
        %1976 = vmatprep.subr.mxu0 0.0
        %1977 = vmatpush1.msra.mxu0 0.0
        %1978 = vmatprep.subr.mxu0 0.0
        %1979 = vmatpush1.msra.mxu0 0.0
        %1980 = vmatprep.mubr.f32.mxu0 0.0
        %1981 = vmatmul.mubr.f32.gmra.mrb[0].mxu0 %v1911
        %v1982 = vpop.f32.mrb[0].mxu0
        %v1983 = vadd.f32 %v1907, %v1982
        %v1984 = vpop.f32.mrb[0].mxu0
        %1985 = vmatprep.mubr.f32.mxu0 0.0
        %1986 = vmatmul.mubr.f32.gmra.mrb[0].mxu0 %v1914
        %v1987 = vpop.f32.mrb[0].mxu0
        %v1988 = vadd.f32 %v1907, %v1987
        %v1989 = vpop.f32.mrb[0].mxu0
        %1990 = vdwg.mxu0
        %v1991 = vadd.f32 %v1798, %v1983
        %v1992 = vadd.f32 %v1799, %v1988
        %v1993 = vld [vmem:[%s705] sm:$0x1]
        %v1994 = vld [vmem:[%s713] sm:$0x1]
        %v1995 = vsel %vm887, %v1991, 0.0
        %1996 = vadd.xlane.f32.xlu0 %v1995
        %v1997 = vpop.xlane.xlu0 %1996
        %v1998 = vsel %vm887, %v1992, 0.0
        %1999 = vadd.xlane.f32.xlu0 %v1998
        %v2000 = vpop.xlane.xlu0 %1999
        %v2001 = vmul.f32 %v1997, %v1763
        %v2002 = vmul.f32 %v2000, %v1763
        %v2003 = vsub.f32 %v1991, %v2001
        %v2004 = vsub.f32 %v1992, %v2002
        %v2005 = vmul.f32 %v2003, %v2003
        %v2006 = vmul.f32 %v2004, %v2004
        %v2007 = vsel %vm887, %v2005, 0.0
        %2008 = vadd.xlane.f32.xlu0 %v2007
        %v2009 = vpop.xlane.xlu0 %2008
        %v2010 = vsel %vm887, %v2006, 0.0
        %2011 = vadd.xlane.f32.xlu0 %v2010
        %v2012 = vpop.xlane.xlu0 %2011
        %v2013 = vmul.f32 %v2009, %v1763
        %v2014 = vmul.f32 %v2012, %v1763
        %v2015 = vadd.f32 %v2013, 1e-05
        %v2016 = vadd.f32 %v2014, 1e-05
        %v2017 = vrsqrt.pop %v2015
        %v2018 = vrsqrt.pop %v2016
        %v2019 = vmul.f32 %v2003, %v2017
        %v2020 = vmul.f32 %v2004, %v2018
        %v2022 = vlaneseq
        %v2023 = vshrl.u32 %v2022, 7
        %v2024 = vsub.s32 0, %v2023
        %v2025 = vrot.slane %v1993, %v2024
        %v2027 = vmul.f32 %v2019, %v2025
        %v2028 = vmul.f32 %v2020, %v2025
        %v2030 = vlaneseq
        %v2031 = vshrl.u32 %v2030, 7
        %v2032 = vsub.s32 0, %v2031
        %v2033 = vrot.slane %v1994, %v2032
        %v2035 = vadd.f32 %v2027, %v2033
        %v2036 = vadd.f32 %v2028, %v2033
        %2037 = vst.msk [vmem:[#allocation2] sm:$0xff] %vm887, %v2035
        %2038 = vst.msk [vmem:[#allocation2 + $0x8] sm:$0xff] %vm887, %v2036
        %p2039 = scmp.eq.s32.totalorder %s42, 1
        // Predicated region
        $region113: #{tpu_custom_call.1} parent=91 // pred_check
          %p2040 = pneg %p2039
        $region114: #{tpu_custom_call.1} parent=91 // pred_check_branch
          %2042 = sbr.rel (%p2040) target = $region116
        $region115: #{tpu_custom_call.1} parent=91 // pred_region
          %vm2043 = vcmask 57344
          %v2044 = vsel %vm2043, %v874, 0.0
          %2045 = vadd.xlane.f32.xlu0 %v2044
          %v2046 = vpop.xlane.xlu0 %2045
          %v2047 = vsel %vm2043, %v875, 0.0
          %2048 = vadd.xlane.f32.xlu0 %v2047
          %v2049 = vpop.xlane.xlu0 %2048
          %v2050 = vmax.f32 %v2046, 1.0
          %v2051 = vmax.f32 %v2049, 1.0
          %v2053 = vsel %vm1144, %v874, 0
          %2055 = vmatprep.subr.mxu0 0.0
          %2056 = vmatpush1.msra.mxu0 %v2035
          %2057 = vmatprep.subr.mxu0 0.0
          %2058 = vmatpush1.msra.mxu0 0.0
          %2059 = vmatprep.subr.mxu0 0.0
          %2060 = vmatpush1.msra.mxu0 0.0
          %2061 = vmatprep.subr.mxu0 0.0
          %2062 = vmatpush1.msra.mxu0 0.0
          %2063 = vmatprep.subr.mxu0 0.0
          %2064 = vmatpush1.msra.mxu0 0.0
          %2065 = vmatprep.subr.mxu0 0.0
          %2066 = vmatpush1.msra.mxu0 0.0
          %2067 = vmatprep.subr.mxu0 0.0
          %2068 = vmatpush1.msra.mxu0 0.0
          %2069 = vmatprep.subr.mxu0 0.0
          %2070 = vmatpush1.msra.mxu0 0.0
          %2071 = vmatprep.subr.mxu0 0.0
          %2072 = vmatpush1.msra.mxu0 0.0
          %2073 = vmatprep.subr.mxu0 0.0
          %2074 = vmatpush1.msra.mxu0 0.0
          %2075 = vmatprep.subr.mxu0 0.0
          %2076 = vmatpush1.msra.mxu0 0.0
          %2077 = vmatprep.subr.mxu0 0.0
          %2078 = vmatpush1.msra.mxu0 0.0
          %2079 = vmatprep.subr.mxu0 0.0
          %2080 = vmatpush1.msra.mxu0 0.0
          %2081 = vmatprep.subr.mxu0 0.0
          %2082 = vmatpush1.msra.mxu0 0.0
          %2083 = vmatprep.subr.mxu0 0.0
          %2084 = vmatpush1.msra.mxu0 0.0
          %2085 = vmatprep.subr.mxu0 0.0
          %2086 = vmatpush1.msra.mxu0 0.0
          %2087 = vmatprep.subr.mxu0 0.0
          %2088 = vmatpush1.msra.mxu0 0.0
          %2089 = vmatprep.subr.mxu0 0.0
          %2090 = vmatpush1.msra.mxu0 0.0
          %2091 = vmatprep.subr.mxu0 0.0
          %2092 = vmatpush1.msra.mxu0 0.0
          %2093 = vmatprep.subr.mxu0 0.0
          %2094 = vmatpush1.msra.mxu0 0.0
          %2095 = vmatprep.subr.mxu0 0.0
          %2096 = vmatpush1.msra.mxu0 0.0
          %2097 = vmatprep.subr.mxu0 0.0
          %2098 = vmatpush1.msra.mxu0 0.0
          %2099 = vmatprep.subr.mxu0 0.0
          %2100 = vmatpush1.msra.mxu0 0.0
          %2101 = vmatprep.subr.mxu0 0.0
          %2102 = vmatpush1.msra.mxu0 0.0
          %2103 = vmatprep.subr.mxu0 0.0
          %2104 = vmatpush1.msra.mxu0 0.0
          %2105 = vmatprep.subr.mxu0 0.0
          %2106 = vmatpush1.msra.mxu0 0.0
          %2107 = vmatprep.subr.mxu0 0.0
          %2108 = vmatpush1.msra.mxu0 0.0
          %2109 = vmatprep.subr.mxu0 0.0
          %2110 = vmatpush1.msra.mxu0 0.0
          %2111 = vmatprep.subr.mxu0 0.0
          %2112 = vmatpush1.msra.mxu0 0.0
          %2113 = vmatprep.subr.mxu0 0.0
          %2114 = vmatpush1.msra.mxu0 0.0
          %2115 = vmatprep.subr.mxu0 0.0
          %2116 = vmatpush1.msra.mxu0 0.0
          %2117 = vmatprep.subr.mxu0 0.0
          %2118 = vmatpush1.msra.mxu0 0.0
          %2119 = vmatprep.mubr.f32.mxu0 0.0
          %2120 = vmatmul.mubr.f32.gmra.mrb[0].mxu0 %v2053
          %v2121 = vpop.f32.mrb[0].mxu0
          %v2122 = vadd.f32 0.0, %v2121
          %v2123 = vpop.f32.mrb[0].mxu0
          %2124 = vdwg.mxu0
          %v2126 = vsel %vm1144, %v875, 0
          %2128 = vmatprep.subr.mxu0 0.0
          %2129 = vmatpush1.msra.mxu0 %v2036
          %2130 = vmatprep.subr.mxu0 0.0
          %2131 = vmatpush1.msra.mxu0 0.0
          %2132 = vmatprep.subr.mxu0 0.0
          %2133 = vmatpush1.msra.mxu0 0.0
          %2134 = vmatprep.subr.mxu0 0.0
          %2135 = vmatpush1.msra.mxu0 0.0
          %2136 = vmatprep.subr.mxu0 0.0
          %2137 = vmatpush1.msra.mxu0 0.0
          %2138 = vmatprep.subr.mxu0 0.0
          %2139 = vmatpush1.msra.mxu0 0.0
          %2140 = vmatprep.subr.mxu0 0.0
          %2141 = vmatpush1.msra.mxu0 0.0
          %2142 = vmatprep.subr.mxu0 0.0
          %2143 = vmatpush1.msra.mxu0 0.0
          %2144 = vmatprep.subr.mxu0 0.0
          %2145 = vmatpush1.msra.mxu0 0.0
          %2146 = vmatprep.subr.mxu0 0.0
          %2147 = vmatpush1.msra.mxu0 0.0
          %2148 = vmatprep.subr.mxu0 0.0
          %2149 = vmatpush1.msra.mxu0 0.0
          %2150 = vmatprep.subr.mxu0 0.0
          %2151 = vmatpush1.msra.mxu0 0.0
          %2152 = vmatprep.subr.mxu0 0.0
          %2153 = vmatpush1.msra.mxu0 0.0
          %2154 = vmatprep.subr.mxu0 0.0
          %2155 = vmatpush1.msra.mxu0 0.0
          %2156 = vmatprep.subr.mxu0 0.0
          %2157 = vmatpush1.msra.mxu0 0.0
          %2158 = vmatprep.subr.mxu0 0.0
          %2159 = vmatpush1.msra.mxu0 0.0
          %2160 = vmatprep.subr.mxu0 0.0
          %2161 = vmatpush1.msra.mxu0 0.0
          %2162 = vmatprep.subr.mxu0 0.0
          %2163 = vmatpush1.msra.mxu0 0.0
          %2164 = vmatprep.subr.mxu0 0.0
          %2165 = vmatpush1.msra.mxu0 0.0
          %2166 = vmatprep.subr.mxu0 0.0
          %2167 = vmatpush1.msra.mxu0 0.0
          %2168 = vmatprep.subr.mxu0 0.0
          %2169 = vmatpush1.msra.mxu0 0.0
          %2170 = vmatprep.subr.mxu0 0.0
          %2171 = vmatpush1.msra.mxu0 0.0
          %2172 = vmatprep.subr.mxu0 0.0
          %2173 = vmatpush1.msra.mxu0 0.0
          %2174 = vmatprep.subr.mxu0 0.0
          %2175 = vmatpush1.msra.mxu0 0.0
          %2176 = vmatprep.subr.mxu0 0.0
          %2177 = vmatpush1.msra.mxu0 0.0
          %2178 = vmatprep.subr.mxu0 0.0
          %2179 = vmatpush1.msra.mxu0 0.0
          %2180 = vmatprep.subr.mxu0 0.0
          %2181 = vmatpush1.msra.mxu0 0.0
          %2182 = vmatprep.subr.mxu0 0.0
          %2183 = vmatpush1.msra.mxu0 0.0
          %2184 = vmatprep.subr.mxu0 0.0
          %2185 = vmatpush1.msra.mxu0 0.0
          %2186 = vmatprep.subr.mxu0 0.0
          %2187 = vmatpush1.msra.mxu0 0.0
          %2188 = vmatprep.subr.mxu0 0.0
          %2189 = vmatpush1.msra.mxu0 0.0
          %2190 = vmatprep.subr.mxu0 0.0
          %2191 = vmatpush1.msra.mxu0 0.0
          %2192 = vmatprep.mubr.f32.mxu0 0.0
          %2193 = vmatmul.mubr.f32.gmra.mrb[0].mxu0 %v2126
          %v2194 = vpop.f32.mrb[0].mxu0
          %v2195 = vadd.f32 0.0, %v2194
          %v2196 = vpop.f32.mrb[0].mxu0
          %2197 = vdwg.mxu0
          %v2198 = vrcp.pop %v2050
          %v2199 = vmul.f32 1.0, %v2198
          %v2200 = vrcp.pop %v2051
          %v2201 = vmul.f32 1.0, %v2200
          %v2202 = vmul.f32 %v2122, %v2199
          %v2203 = vmul.f32 %v2195, %v2201
          %v2204 = vld [vmem:[%s14] sm:$0xff]
          %v2205 = vld [vmem:[%s14 + $0x8] sm:$0xff]
          %v2206 = vld [vmem:[%s14 + $0x10] sm:$0xff]
          %v2207 = vld [vmem:[%s14 + $0x18] sm:$0xff]
          %v2208 = vld [vmem:[#allocation9] sm:$0x1]
          %v2210 = vlaneseq
          %v2211 = vshrl.u32 %v2210, 7
          %v2212 = vsub.s32 0, %v2211
          %v2213 = vrot.slane %v2208, %v2212
          %v2217 = vrot.slane %v2203, 7
          %vm2218 = vcmask 1041409
          %v2219 = vsel %vm2218, %v2217, %v2202
          %v2220 = vsel %vm887, %v2219, 0
          %2222 = vmatprep.subr.mxu0 0.0
          %2223 = vmatpush1.msra.mxu0 %v2204
          %2224 = vmatprep.subr.mxu0 0.0
          %2225 = vmatpush1.msra.mxu0 %v2205
          %2226 = vmatprep.subr.mxu0 0.0
          %2227 = vmatpush1.msra.mxu0 %v2206
          %2228 = vmatprep.subr.mxu0 0.0
          %2229 = vmatpush1.msra.mxu0 %v2207
          %2230 = vmatprep.subr.mxu0 0.0
          %2231 = vmatpush1.msra.mxu0 0.0
          %2232 = vmatprep.subr.mxu0 0.0
          %2233 = vmatpush1.msra.mxu0 0.0
          %2234 = vmatprep.subr.mxu0 0.0
          %2235 = vmatpush1.msra.mxu0 0.0
          %2236 = vmatprep.subr.mxu0 0.0
          %2237 = vmatpush1.msra.mxu0 0.0
          %2238 = vmatprep.subr.mxu0 0.0
          %2239 = vmatpush1.msra.mxu0 0.0
          %2240 = vmatprep.subr.mxu0 0.0
          %2241 = vmatpush1.msra.mxu0 0.0
          %2242 = vmatprep.subr.mxu0 0.0
          %2243 = vmatpush1.msra.mxu0 0.0
          %2244 = vmatprep.subr.mxu0 0.0
          %2245 = vmatpush1.msra.mxu0 0.0
          %2246 = vmatprep.subr.mxu0 0.0
          %2247 = vmatpush1.msra.mxu0 0.0
          %2248 = vmatprep.subr.mxu0 0.0
          %2249 = vmatpush1.msra.mxu0 0.0
          %2250 = vmatprep.subr.mxu0 0.0
          %2251 = vmatpush1.msra.mxu0 0.0
          %2252 = vmatprep.subr.mxu0 0.0
          %2253 = vmatpush1.msra.mxu0 0.0
          %2254 = vmatprep.subr.mxu0 0.0
          %2255 = vmatpush1.msra.mxu0 0.0
          %2256 = vmatprep.subr.mxu0 0.0
          %2257 = vmatpush1.msra.mxu0 0.0
          %2258 = vmatprep.subr.mxu0 0.0
          %2259 = vmatpush1.msra.mxu0 0.0
          %2260 = vmatprep.subr.mxu0 0.0
          %2261 = vmatpush1.msra.mxu0 0.0
          %2262 = vmatprep.subr.mxu0 0.0
          %2263 = vmatpush1.msra.mxu0 0.0
          %2264 = vmatprep.subr.mxu0 0.0
          %2265 = vmatpush1.msra.mxu0 0.0
          %2266 = vmatprep.subr.mxu0 0.0
          %2267 = vmatpush1.msra.mxu0 0.0
          %2268 = vmatprep.subr.mxu0 0.0
          %2269 = vmatpush1.msra.mxu0 0.0
          %2270 = vmatprep.subr.mxu0 0.0
          %2271 = vmatpush1.msra.mxu0 0.0
          %2272 = vmatprep.subr.mxu0 0.0
          %2273 = vmatpush1.msra.mxu0 0.0
          %2274 = vmatprep.subr.mxu0 0.0
          %2275 = vmatpush1.msra.mxu0 0.0
          %2276 = vmatprep.subr.mxu0 0.0
          %2277 = vmatpush1.msra.mxu0 0.0
          %2278 = vmatprep.subr.mxu0 0.0
          %2279 = vmatpush1.msra.mxu0 0.0
          %2280 = vmatprep.subr.mxu0 0.0
          %2281 = vmatpush1.msra.mxu0 0.0
          %2282 = vmatprep.subr.mxu0 0.0
          %2283 = vmatpush1.msra.mxu0 0.0
          %2284 = vmatprep.subr.mxu0 0.0
          %2285 = vmatpush1.msra.mxu0 0.0
          %2286 = vmatprep.mubr.f32.mxu0 0.0
          %2287 = vmatmul.mubr.f32.gmra.mrb[0].mxu0 %v2220
          %v2288 = vpop.f32.mrb[0].mxu0
          %v2289 = vadd.f32 %v2213, %v2288
          %v2290 = vpop.f32.mrb[0].mxu0
          %2291 = vdwg.mxu0
          %v2292 = vmax.f32 %v2289, 0.0
          %v2293 = vld [vmem:[%s16] sm:$0xff]
          %v2294 = vld [vmem:[%s16 + $0x8] sm:$0xff]
          %v2295 = vld [vmem:[%s16 + $0x10] sm:$0xff]
          %v2296 = vld [vmem:[%s16 + $0x18] sm:$0xff]
          %v2297 = vld [vmem:[%s16 + $0x20] sm:$0xff]
          %v2298 = vld [vmem:[%s16 + $0x28] sm:$0xff]
          %v2299 = vld [vmem:[%s16 + $0x30] sm:$0xff]
          %v2300 = vld [vmem:[%s16 + $0x38] sm:$0xff]
          %v2301 = vld [vmem:[%s17] sm:$0x1]
          %v2303 = vlaneseq
          %v2304 = vshrl.u32 %v2303, 7
          %v2305 = vsub.s32 0, %v2304
          %v2306 = vrot.slane %v2301, %v2305
          %v2309 = vsel %vm1909, %v2292, 0
          %2311 = vmatprep.subr.mxu0 0.0
          %2312 = vmatpush1.msra.mxu0 %v2293
          %2313 = vmatprep.subr.mxu0 0.0
          %2314 = vmatpush1.msra.mxu0 %v2294
          %2315 = vmatprep.subr.mxu0 0.0
          %2316 = vmatpush1.msra.mxu0 %v2295
          %2317 = vmatprep.subr.mxu0 0.0
          %2318 = vmatpush1.msra.mxu0 %v2296
          %2319 = vmatprep.subr.mxu0 0.0
          %2320 = vmatpush1.msra.mxu0 %v2297
          %2321 = vmatprep.subr.mxu0 0.0
          %2322 = vmatpush1.msra.mxu0 %v2298
          %2323 = vmatprep.subr.mxu0 0.0
          %2324 = vmatpush1.msra.mxu0 %v2299
          %2325 = vmatprep.subr.mxu0 0.0
          %2326 = vmatpush1.msra.mxu0 %v2300
          %2327 = vmatprep.subr.mxu0 0.0
          %2328 = vmatpush1.msra.mxu0 0.0
          %2329 = vmatprep.subr.mxu0 0.0
          %2330 = vmatpush1.msra.mxu0 0.0
          %2331 = vmatprep.subr.mxu0 0.0
          %2332 = vmatpush1.msra.mxu0 0.0
          %2333 = vmatprep.subr.mxu0 0.0
          %2334 = vmatpush1.msra.mxu0 0.0
          %2335 = vmatprep.subr.mxu0 0.0
          %2336 = vmatpush1.msra.mxu0 0.0
          %2337 = vmatprep.subr.mxu0 0.0
          %2338 = vmatpush1.msra.mxu0 0.0
          %2339 = vmatprep.subr.mxu0 0.0
          %2340 = vmatpush1.msra.mxu0 0.0
          %2341 = vmatprep.subr.mxu0 0.0
          %2342 = vmatpush1.msra.mxu0 0.0
          %2343 = vmatprep.subr.mxu0 0.0
          %2344 = vmatpush1.msra.mxu0 0.0
          %2345 = vmatprep.subr.mxu0 0.0
          %2346 = vmatpush1.msra.mxu0 0.0
          %2347 = vmatprep.subr.mxu0 0.0
          %2348 = vmatpush1.msra.mxu0 0.0
          %2349 = vmatprep.subr.mxu0 0.0
          %2350 = vmatpush1.msra.mxu0 0.0
          %2351 = vmatprep.subr.mxu0 0.0
          %2352 = vmatpush1.msra.mxu0 0.0
          %2353 = vmatprep.subr.mxu0 0.0
          %2354 = vmatpush1.msra.mxu0 0.0
          %2355 = vmatprep.subr.mxu0 0.0
          %2356 = vmatpush1.msra.mxu0 0.0
          %2357 = vmatprep.subr.mxu0 0.0
          %2358 = vmatpush1.msra.mxu0 0.0
          %2359 = vmatprep.subr.mxu0 0.0
          %2360 = vmatpush1.msra.mxu0 0.0
          %2361 = vmatprep.subr.mxu0 0.0
          %2362 = vmatpush1.msra.mxu0 0.0
          %2363 = vmatprep.subr.mxu0 0.0
          %2364 = vmatpush1.msra.mxu0 0.0
          %2365 = vmatprep.subr.mxu0 0.0
          %2366 = vmatpush1.msra.mxu0 0.0
          %2367 = vmatprep.subr.mxu0 0.0
          %2368 = vmatpush1.msra.mxu0 0.0
          %2369 = vmatprep.subr.mxu0 0.0
          %2370 = vmatpush1.msra.mxu0 0.0
          %2371 = vmatprep.subr.mxu0 0.0
          %2372 = vmatpush1.msra.mxu0 0.0
          %2373 = vmatprep.subr.mxu0 0.0
          %2374 = vmatpush1.msra.mxu0 0.0
          %2375 = vmatprep.mubr.f32.mxu0 0.0
          %2376 = vmatmul.mubr.f32.gmra.mrb[0].mxu0 %v2309
          %v2377 = vpop.f32.mrb[0].mxu0
          %v2378 = vadd.f32 %v2306, %v2377
          %v2379 = vpop.f32.mrb[0].mxu0
          %2380 = vdwg.mxu0
          %v2383 = vunpack.c.l.s4 1966171168
          %v2384 = vunpack.c.0.s8 %v2383
          %v2385 = vlaneseq
          %v2386 = vshrl.u32 %v2385, 7
          %v2387 = vsub.s32 %v2384, %v2386
          %v2388 = vrot.slane %v2378, %v2387
          %v2389 = vcombine.high %v2388, %v2388
          %v2391 = vunpack.c.l.s4 1966171168
          %v2392 = vunpack.c.0.s8 %v2391
          %v2393 = vlaneseq
          %v2394 = vshrl.u32 %v2393, 7
          %v2395 = vsub.s32 %v2392, %v2394
          %v2396 = vrot.slane %v2388, %v2395
          %v2398 = vunpack.c.l.s4 1966171168
          %v2399 = vunpack.c.0.s8 %v2398
          %v2400 = vlaneseq
          %v2401 = vshrl.u32 %v2400, 7
          %v2402 = vsub.s32 %v2399, %v2401
          %v2403 = vrot.slane %v2389, %v2402
          %vm2406 = vcmask 253952
          %2407 = vst.msk [vmem:[#allocation11] sm:$0x1] %vm2406, %v2396
          %2408 = vst.msk [vmem:[#allocation11 + $0x1] sm:$0x1] %vm2406, %v2403
        $region116: #{tpu_custom_call.1} parent=91 // pred_fallthru
          _
        // Predicated region
        $region117: #{tpu_custom_call.1} parent=91 // pred_check
          %p2409 = pneg %p515
        $region118: #{tpu_custom_call.1} parent=91 // pred_check_branch
          %2411 = sbr.rel (%p2409) target = $region120
        $region119: #{tpu_custom_call.1} parent=91 // pred_region
          %s2412 = smul.u32 2, %s41
          %s2414 = ssub.s32 32, 32
          %2415 = vsyncadd [#allocation5], %s2414
          %s2416 = smul.addr %s2412, 16
          %s2417 = scalar_lea.hbm %s18, %s2416
          %s2418 = sshll.u32 [#allocation11], 4
          %s2419 = int_to_ptr.vmem [resolvable:$true] %s2418
          %2424 = dma.vmem_to_hbm [thread:$0]  %s2419, 32, %s2417, [#allocation5], 16, 16, 1
        $region120: #{tpu_custom_call.1} parent=91 // pred_fallthru
          _
        // Predicated region
        $region121: #{tpu_custom_call.1} parent=91 // pred_check
          %p2425 = pneg %p515
        $region122: #{tpu_custom_call.1} parent=91 // pred_check_branch
          %2427 = sbr.rel (%p2425) target = $region124
        $region123: #{tpu_custom_call.1} parent=91 // pred_region
          %2428 = dma.done [#allocation5], 32
        $region124: #{tpu_custom_call.1} parent=91 // pred_fallthru
          _
      $region92: #{tpu_custom_call.1} parent=5 // pred_fallthru
        _
      %p2429 = scmp.le.s32.totalorder 2, %s32
      // Predicated region
      $region125: #{tpu_custom_call.1} parent=5 // pred_check
        %p2430 = pneg %p2429
      $region126: #{tpu_custom_call.1} parent=5 // pred_check_branch
        %2432 = sbr.rel (%p2430) target = $region128
      $region127: #{tpu_custom_call.1} parent=5 // pred_region
        %s2433 = ssub.s32 %s32, 2
      $region128: #{tpu_custom_call.1} parent=5 // pred_fallthru
        _
    $region6: #{tpu_custom_call.1} parent=1 // loop_footer
      %s36 = sadd.s32 1, %s32
    $region7: #{tpu_custom_call.1} parent=1 // loop_footer_branch
      %31 = sbr.rel target = $region3
    $region8: #{tpu_custom_call.1} parent=1 // loop_exit
      _
    %2434 = vsyncpa [#allocation4], 1
    %s2435 = scalar_lea.sflag [#allocation4], 1
    %2436 = vsyncpa %s2435, 1
    %2437 = vsyncpa [#allocation7], 1
    %s2438 = scalar_lea.sflag [#allocation7], 1
    %2439 = vsyncpa %s2438, 1
    %2440 = vsyncpa [#allocation10], 1
    %2441 = vsyncpa [#allocation5], 1
    %s2442 = scalar_lea.sflag [#allocation5], 1
    %2443 = vsyncpa %s2442, 1

</llo_original>
